<compile_context>
chip_gen: v7x
topology: tpu7x:2x2x1
jax: 0.10.0
libtpu: 0.0.40
codegen_flags: <defaults>
</compile_context>

<pallas_src>
import jax
import jax.numpy as jnp
from jax.experimental import pallas as pl
from jax.experimental.pallas import tpu as pltpu

IN_FEATURES = 32 * 32 * 3   # 3072
H1, H2, OUT = 10, 10, 10    # Perceptron10_10_C10
PAD = 128                   # lane-aligned padded width for hidden/output dims
MAX_TN = 1024               # batch-tile rows (f32 x: 2 bufs * 1024*3072*4B = 24 MiB)
ROW_ALIGN = 8               # sublane alignment for tile rows
VMEM_LIMIT = 48 * 1024 * 1024


def _mlp_kernel(x_ref, w1_ref, b1_ref, w2_ref, b2_ref, w3_ref, b3_ref, o_ref):
    # f32 -> bf16 cast fused into the kernel (x streamed as f32 from HBM).
    x = x_ref[...].astype(jnp.bfloat16)                                 # (TN, 3072) bf16
    h1 = jnp.dot(x, w1_ref[...], preferred_element_type=jnp.float32)    # (TN, 128) f32
    h1 = jnp.maximum(h1 + b1_ref[...], 0.0)                             # ReLU
    h2 = jnp.dot(h1.astype(jnp.bfloat16), w2_ref[...],
                 preferred_element_type=jnp.float32)                    # (TN, 128) f32
    h2 = jnp.maximum(h2 + b2_ref[...], 0.0)                             # ReLU
    o = jnp.dot(h2.astype(jnp.bfloat16), w3_ref[...],
                preferred_element_type=jnp.float32)                     # (TN, 128) f32
    # Classifier layer: no ReLU.  bf16 writeback on a lane-dense 128-wide block.
    o_ref[...] = (o + b3_ref[...]).astype(o_ref.dtype)


def _round_up(a, b):
    return (a + b - 1) // b * b


def perceptron_forward(x_nchw, params):
    """Forward pass matching Perceptron10_10_C10.forward (PyTorch NCHW input)."""
    n = x_nchw.shape[0]
    # Same flattening as torch's x.view(-1, 32*32*3) on an NCHW tensor.
    # NOTE: no dtype cast here — the kernel reads f32 tiles and casts in VMEM.
    x_flat = x_nchw.reshape(n, -1)                                       # (N, 3072) f32
    assert x_flat.shape[1] == IN_FEATURES

    w1, b1, w2, b2, w3, b3 = params                                      # padded to 128 lanes

    # Cap the tile at ceil(n/2) rows (>= 2 grid steps when possible) so the
    # "parallel" batch axis can actually be split across v7x's two TensorCores.
    tn = min(MAX_TN, _round_up(pl.cdiv(n, 2), ROW_ALIGN))
    grid = (pl.cdiv(n, tn),)

    x_spec = pl.BlockSpec((tn, IN_FEATURES), lambda i: (i, 0))
    out_spec = pl.BlockSpec((tn, PAD), lambda i: (i, 0))
    # Weights/biases: same block every step -> loaded once, held resident.
    w1_spec = pl.BlockSpec((IN_FEATURES, PAD), lambda i: (0, 0))
    wh_spec = pl.BlockSpec((PAD, PAD), lambda i: (0, 0))
    b_spec = pl.BlockSpec((1, PAD), lambda i: (0, 0))

    out = pl.pallas_call(
        _mlp_kernel,
        out_shape=jax.ShapeDtypeStruct((n, PAD), jnp.bfloat16),
        grid=grid,
        in_specs=[x_spec, w1_spec, b_spec, wh_spec, b_spec, wh_spec, b_spec],
        out_specs=out_spec,
        compiler_params=pltpu.CompilerParams(
            dimension_semantics=("parallel",),
            vmem_limit_bytes=VMEM_LIMIT),
    )(x_flat, w1, b1, w2, b2, w3, b3)
    return out[:, :OUT].astype(jnp.float32)                             # (N, 10)


def _torch_linear_init(key, fan_in, fan_out):
    """Deterministic init mimicking nn.Linear: U(-1/sqrt(fan_in), 1/sqrt(fan_in))."""
    kw, kb = jax.random.split(key)
    bound = 1.0 / jnp.sqrt(jnp.float32(fan_in))
    # stored as (in, out) — i.e. transpose of torch's (out, in) weight
    w = jax.random.uniform(kw, (fan_in, fan_out), jnp.float32, -bound, bound)
    b = jax.random.uniform(kb, (fan_out,), jnp.float32, -bound, bound)
    return w, b


def _pad_to(arr, shape):
    pads = [(0, t - s) for s, t in zip(arr.shape, shape)]
    return jnp.pad(arr, pads)


def make_params(key):
    k1, k2, k3 = jax.random.split(key, 3)
    w1, b1 = _torch_linear_init(k1, IN_FEATURES, H1)   # (3072, 10), (10,)
    w2, b2 = _torch_linear_init(k2, H1, H2)            # (10, 10),   (10,)
    w3, b3 = _torch_linear_init(k3, H2, OUT)           # (10, 10),   (10,)

    # Zero-pad feature dims to 128 lanes; weights stored bf16, biases f32
    # (added post-accumulation). Zero columns + zero bias + ReLU stay exactly
    # zero, so padding does not change the math. Biases kept 2-D (1, 128).
    w1p = _pad_to(w1, (IN_FEATURES, PAD)).astype(jnp.bfloat16)
    w2p = _pad_to(w2, (PAD, PAD)).astype(jnp.bfloat16)
    w3p = _pad_to(w3, (PAD, PAD)).astype(jnp.bfloat16)
    b1p = _pad_to(b1.reshape(1, H1), (1, PAD))
    b2p = _pad_to(b2.reshape(1, H2), (1, PAD))
    b3p = _pad_to(b3.reshape(1, OUT), (1, PAD))
    return (w1p, b1p, w2p, b2p, w3p, b3p), (w1, b1, w2, b2, w3, b3)


def reference_forward(x_nchw, raw_params):
    """Pure-JAX f32 reference matching the PyTorch module exactly."""
    w1, b1, w2, b2, w3, b3 = raw_params
    x = x_nchw.reshape(x_nchw.shape[0], -1).astype(jnp.float32)
    h1 = jnp.maximum(x @ w1 + b1, 0.0)
    h2 = jnp.maximum(h1 @ w2 + b2, 0.0)
    return h2 @ w3 + b3


if __name__ == "__main__":
    key = jax.random.PRNGKey(0)
    kx, kp = jax.random.split(key)

    # Small CIFAR-like batch: NCHW (2, 3, 32, 32) -> flattened dim 3072.
    x = jax.random.normal(kx, (2, 3, 32, 32), dtype=jnp.float32)

    padded_params, raw_params = make_params(kp)

    out = perceptron_forward(x, padded_params)
    out = jax.block_until_ready(out)

    ref = reference_forward(x, raw_params)
    assert out.shape == (2, 10), out.shape
    # bf16 inputs/weights/output with f32 accumulation -> loosened tolerance.
    assert jnp.allclose(out, ref, atol=5e-2, rtol=5e-2), (
        f"max abs err {jnp.max(jnp.abs(out - ref))}")

    print("KERNEL_OK")
</pallas_src>

<mosaic_0001>
module attributes {stable_mosaic.version = 11 : i64} {
  func.func @_mlp_kernel(%arg0: i32, %arg1: memref<8x3072xf32, #tpu.memory_space<vmem>>, %arg2: memref<3072x128xbf16, #tpu.memory_space<vmem>>, %arg3: memref<1x128xf32, #tpu.memory_space<vmem>>, %arg4: memref<128x128xbf16, #tpu.memory_space<vmem>>, %arg5: memref<1x128xf32, #tpu.memory_space<vmem>>, %arg6: memref<128x128xbf16, #tpu.memory_space<vmem>>, %arg7: memref<1x128xf32, #tpu.memory_space<vmem>>, %arg8: memref<8x128xbf16, #tpu.memory_space<vmem>>) attributes {dimension_semantics = [#tpu.dimension_semantics<parallel>], iteration_bounds = array<i64: 1>, scalar_prefetch = 0 : i64, scratch_operands = 0 : i64, tpu.core_type = #tpu.core_type<tc>, window_params = [{transform_indices = @transform_0, window_bounds = array<i64: 8, 3072>}, {pipeline_mode = #tpu.pipeline_mode<synchronous>, transform_indices = @transform_1, window_bounds = array<i64: 3072, 128>}, {pipeline_mode = #tpu.pipeline_mode<synchronous>, transform_indices = @transform_2, window_bounds = array<i64: 1, 128>}, {pipeline_mode = #tpu.pipeline_mode<synchronous>, transform_indices = @transform_3, window_bounds = array<i64: 128, 128>}, {pipeline_mode = #tpu.pipeline_mode<synchronous>, transform_indices = @transform_4, window_bounds = array<i64: 1, 128>}, {pipeline_mode = #tpu.pipeline_mode<synchronous>, transform_indices = @transform_5, window_bounds = array<i64: 128, 128>}, {pipeline_mode = #tpu.pipeline_mode<synchronous>, transform_indices = @transform_6, window_bounds = array<i64: 1, 128>}, {transform_indices = @transform_7, window_bounds = array<i64: 8, 128>}]} {
    %c0 = arith.constant 0 : index
    %c0_0 = arith.constant 0 : index
    %0 = vector.load %arg1[%c0, %c0_0] : memref<8x3072xf32, #tpu.memory_space<vmem>>, vector<8x3072xf32>
    %1 = arith.truncf %0 : vector<8x3072xf32> to vector<8x3072xbf16>
    %c0_1 = arith.constant 0 : index
    %c0_2 = arith.constant 0 : index
    %2 = vector.load %arg2[%c0_1, %c0_2] : memref<3072x128xbf16, #tpu.memory_space<vmem>>, vector<3072x128xbf16>
    %cst = arith.constant dense<0.000000e+00> : vector<8x128xf32>
    %3 = tpu.matmul %1, %2, %cst {dimension_numbers = #tpu.dot_dimension_numbers<[1], [0], [0], [1], [0, 0, 1, 1], [], []>} : vector<8x3072xbf16>, vector<3072x128xbf16>, vector<8x128xf32> -> vector<8x128xf32>
    %c0_3 = arith.constant 0 : index
    %c0_4 = arith.constant 0 : index
    %4 = vector.load %arg3[%c0_3, %c0_4] : memref<1x128xf32, #tpu.memory_space<vmem>>, vector<1x128xf32>
    %5 = vector.broadcast %4 : vector<1x128xf32> to vector<8x128xf32>
    %6 = arith.addf %3, %5 : vector<8x128xf32>
    %cst_5 = arith.constant 0.000000e+00 : f32
    %7 = vector.broadcast %cst_5 : f32 to vector<8x128xf32>
    %8 = arith.maximumf %6, %7 : vector<8x128xf32>
    %9 = arith.truncf %8 : vector<8x128xf32> to vector<8x128xbf16>
    %c0_6 = arith.constant 0 : index
    %c0_7 = arith.constant 0 : index
    %10 = vector.load %arg4[%c0_6, %c0_7] : memref<128x128xbf16, #tpu.memory_space<vmem>>, vector<128x128xbf16>
    %cst_8 = arith.constant dense<0.000000e+00> : vector<8x128xf32>
    %11 = tpu.matmul %9, %10, %cst_8 {dimension_numbers = #tpu.dot_dimension_numbers<[1], [0], [0], [1], [0, 0, 1, 1], [], []>} : vector<8x128xbf16>, vector<128x128xbf16>, vector<8x128xf32> -> vector<8x128xf32>
    %c0_9 = arith.constant 0 : index
    %c0_10 = arith.constant 0 : index
    %12 = vector.load %arg5[%c0_9, %c0_10] : memref<1x128xf32, #tpu.memory_space<vmem>>, vector<1x128xf32>
    %13 = vector.broadcast %12 : vector<1x128xf32> to vector<8x128xf32>
    %14 = arith.addf %11, %13 : vector<8x128xf32>
    %cst_11 = arith.constant 0.000000e+00 : f32
    %15 = vector.broadcast %cst_11 : f32 to vector<8x128xf32>
    %16 = arith.maximumf %14, %15 : vector<8x128xf32>
    %17 = arith.truncf %16 : vector<8x128xf32> to vector<8x128xbf16>
    %c0_12 = arith.constant 0 : index
    %c0_13 = arith.constant 0 : index
    %18 = vector.load %arg6[%c0_12, %c0_13] : memref<128x128xbf16, #tpu.memory_space<vmem>>, vector<128x128xbf16>
    %cst_14 = arith.constant dense<0.000000e+00> : vector<8x128xf32>
    %19 = tpu.matmul %17, %18, %cst_14 {dimension_numbers = #tpu.dot_dimension_numbers<[1], [0], [0], [1], [0, 0, 1, 1], [], []>} : vector<8x128xbf16>, vector<128x128xbf16>, vector<8x128xf32> -> vector<8x128xf32>
    %c0_15 = arith.constant 0 : index
    %c0_16 = arith.constant 0 : index
    %20 = vector.load %arg7[%c0_15, %c0_16] : memref<1x128xf32, #tpu.memory_space<vmem>>, vector<1x128xf32>
    %21 = vector.broadcast %20 : vector<1x128xf32> to vector<8x128xf32>
    %22 = arith.addf %19, %21 : vector<8x128xf32>
    %23 = arith.truncf %22 : vector<8x128xf32> to vector<8x128xbf16>
    %c0_17 = arith.constant 0 : index
    %c0_18 = arith.constant 0 : index
    %24 = vector.load %arg8[%c0_17, %c0_18] : memref<8x128xbf16, #tpu.memory_space<vmem>>, vector<8x128xbf16>
    tpu.vector_store %arg8[%c0_17, %c0_18], %23 {strides = array<i32>} : memref<8x128xbf16, #tpu.memory_space<vmem>>, vector<8x128xbf16>,
    return
  }
  func.func @transform_0(%arg0: i32) -> (i32, i32) {
    %c0_i32 = arith.constant 0 : i32
    %c0_i32_0 = arith.constant 0 : i32
    return %arg0, %c0_i32 : i32, i32
  }
  func.func @transform_1(%arg0: i32) -> (i32, i32) {
    %c0_i32 = arith.constant 0 : i32
    %c0_i32_0 = arith.constant 0 : i32
    %c0_i32_1 = arith.constant 0 : i32
    return %c0_i32, %c0_i32_0 : i32, i32
  }
  func.func @transform_2(%arg0: i32) -> (i32, i32) {
    %c0_i32 = arith.constant 0 : i32
    %c0_i32_0 = arith.constant 0 : i32
    %c0_i32_1 = arith.constant 0 : i32
    return %c0_i32, %c0_i32_0 : i32, i32
  }
  func.func @transform_3(%arg0: i32) -> (i32, i32) {
    %c0_i32 = arith.constant 0 : i32
    %c0_i32_0 = arith.constant 0 : i32
    %c0_i32_1 = arith.constant 0 : i32
    return %c0_i32, %c0_i32_0 : i32, i32
  }
  func.func @transform_4(%arg0: i32) -> (i32, i32) {
    %c0_i32 = arith.constant 0 : i32
    %c0_i32_0 = arith.constant 0 : i32
    %c0_i32_1 = arith.constant 0 : i32
    return %c0_i32, %c0_i32_0 : i32, i32
  }
  func.func @transform_5(%arg0: i32) -> (i32, i32) {
    %c0_i32 = arith.constant 0 : i32
    %c0_i32_0 = arith.constant 0 : i32
    %c0_i32_1 = arith.constant 0 : i32
    return %c0_i32, %c0_i32_0 : i32, i32
  }
  func.func @transform_6(%arg0: i32) -> (i32, i32) {
    %c0_i32 = arith.constant 0 : i32
    %c0_i32_0 = arith.constant 0 : i32
    %c0_i32_1 = arith.constant 0 : i32
    return %c0_i32, %c0_i32_0 : i32, i32
  }
  func.func @transform_7(%arg0: i32) -> (i32, i32) {
    %c0_i32 = arith.constant 0 : i32
    %c0_i32_0 = arith.constant 0 : i32
    return %arg0, %c0_i32 : i32, i32
  }
}

</mosaic_0001>

<llo_original>
// kernel: tpu_custom_call.1
$region0: #{tpu_custom_call.1}
  #allocation0 [shape = 'u32[]', space=smem, size = 0x4, offset = 0x4, fixed_abs, tag = 'smem constant byte address 0x4 - core index']
  #allocation1 [shape = 'u32[144,128]{1,0:T(1,128)}', space=vmem, size = 0x12000, scoped, tag = 'internal scratch']
  %s0 = inlined_call_operand.hbm [shape: f32[2,3072], index: 0, kind: input, shape index: {}]
  %s1 = inlined_call_operand.hbm [shape: bf16[3072,128], index: 1, kind: input, shape index: {}]
  %s2 = inlined_call_operand.vmem [shape: f32[1,128], index: 2, kind: input, shape index: {}]
  %s3 = inlined_call_operand.hbm [shape: bf16[128,128], index: 3, kind: input, shape index: {}]
  %s4 = inlined_call_operand.vmem [shape: f32[1,128], index: 4, kind: input, shape index: {}]
  %s5 = inlined_call_operand.hbm [shape: bf16[128,128], index: 5, kind: input, shape index: {}]
  %s6 = inlined_call_operand.vmem [shape: f32[1,128], index: 6, kind: input, shape index: {}]
  %s7 = inlined_call_operand.hbm [shape: bf16[2,128], index: 7, kind: output, shape index: {}]
  %s8 = sld [smem:[#allocation0]]
  $region54: #{tpu_custom_call.1} parent=0
    _
  %s10 = ssub.s32 1, %s8
  %s11 = scalar_select 0, %s10, %s8
  $region1: #{tpu_custom_call.1} parent=0
    #allocation2 [shape = 'u8[98304]{0}', space=vmem, size = 0x18000, scoped, tag = 'input window, operand 0, single buffered']
    #allocation3 [shape = 's32[1]{0}', space=sflag, size = 0x4, scoped, tag = 'scoped memory for tpu_custom_call.1']
    #allocation4 [shape = 's32[1]{0}', space=sflag, size = 0x4, scoped, tag = 'scoped memory for tpu_custom_call.1']
    #allocation5 [shape = 'u8[786432]{0}', space=vmem, size = 0xc0000, scoped, tag = 'input window, operand 1, single buffered']
    #allocation6 [shape = 's32[1]{0}', space=sflag, size = 0x4, scoped, tag = 'scoped memory for tpu_custom_call.1']
    #allocation7 [shape = 'u8[32768]{0}', space=vmem, size = 0x8000, scoped, tag = 'input window, operand 3, single buffered']
    #allocation8 [shape = 'u8[32768]{0}', space=vmem, size = 0x8000, scoped, tag = 'input window, operand 5, single buffered']
    #allocation9 [shape = 's32[1]{0}', space=sflag, size = 0x4, scoped, tag = 'scoped memory for tpu_custom_call.1']
    #allocation10 [shape = 'u8[2048]{0}', space=vmem, size = 0x800, scoped, tag = 'output window, operand 0, single buffered']
    %12 = vsyncpa [#allocation3], 0
    %13 = vsyncpa [#allocation6], 0
    %14 = vsyncpa [#allocation9], 0
    %15 = vsyncpa [#allocation4], 0
    // Predicated region
    $region2: #{tpu_custom_call.1} parent=1 // pred_check
      _
    $region3: #{tpu_custom_call.1} parent=1 // pred_check_branch
      %17 = sbr.rel (0) target = $region5
    $region4: #{tpu_custom_call.1} parent=1 // pred_region
      %s19 = ssub.s32 3072, 768
      %20 = vsyncadd [#allocation3], %s19
      %s21 = sshll.u32 [#allocation2], 4
      %s22 = int_to_ptr.vmem [resolvable:$true] %s21
      %27 = dma.hbm_to_vmem [thread:$0]  %s0, 768, %s22, [#allocation3], 768, 768, 48
    $region5: #{tpu_custom_call.1} parent=1 // pred_fallthru
      _
    // Predicated region
    $region6: #{tpu_custom_call.1} parent=1 // pred_check
      _
    $region7: #{tpu_custom_call.1} parent=1 // pred_check_branch
      %29 = sbr.rel (0) target = $region9
    $region8: #{tpu_custom_call.1} parent=1 // pred_region
      %s31 = ssub.s32 24576, 24576
      %32 = vsyncadd [#allocation6], %s31
      %s33 = sshll.u32 [#allocation5], 4
      %s34 = int_to_ptr.vmem [resolvable:$true] %s33
      %39 = dma.hbm_to_vmem [thread:$0]  %s1, 24576, %s34, [#allocation6], 64, 64, 4
    $region9: #{tpu_custom_call.1} parent=1 // pred_fallthru
      _
    // Predicated region
    $region10: #{tpu_custom_call.1} parent=1 // pred_check
      _
    $region11: #{tpu_custom_call.1} parent=1 // pred_check_branch
      %41 = sbr.rel (0) target = $region13
    $region12: #{tpu_custom_call.1} parent=1 // pred_region
      _
    $region13: #{tpu_custom_call.1} parent=1 // pred_fallthru
      _
    // Predicated region
    $region14: #{tpu_custom_call.1} parent=1 // pred_check
      _
    $region15: #{tpu_custom_call.1} parent=1 // pred_check_branch
      %43 = sbr.rel (0) target = $region17
    $region16: #{tpu_custom_call.1} parent=1 // pred_region
      %s45 = ssub.s32 1024, 1024
      %46 = vsyncadd [#allocation6], %s45
      %s47 = sshll.u32 [#allocation7], 4
      %s48 = int_to_ptr.vmem [resolvable:$true] %s47
      %53 = dma.hbm_to_vmem [thread:$0]  %s3, 1024, %s48, [#allocation6], 64, 64, 4
    $region17: #{tpu_custom_call.1} parent=1 // pred_fallthru
      _
    // Predicated region
    $region18: #{tpu_custom_call.1} parent=1 // pred_check
      _
    $region19: #{tpu_custom_call.1} parent=1 // pred_check_branch
      %55 = sbr.rel (0) target = $region21
    $region20: #{tpu_custom_call.1} parent=1 // pred_region
      _
    $region21: #{tpu_custom_call.1} parent=1 // pred_fallthru
      _
    // Predicated region
    $region22: #{tpu_custom_call.1} parent=1 // pred_check
      _
    $region23: #{tpu_custom_call.1} parent=1 // pred_check_branch
      %57 = sbr.rel (0) target = $region25
    $region24: #{tpu_custom_call.1} parent=1 // pred_region
      %s59 = ssub.s32 1024, 1024
      %60 = vsyncadd [#allocation9], %s59
      %s61 = sshll.u32 [#allocation8], 4
      %s62 = int_to_ptr.vmem [resolvable:$true] %s61
      %67 = dma.hbm_to_vmem [thread:$0]  %s5, 1024, %s62, [#allocation9], 64, 64, 4
    $region25: #{tpu_custom_call.1} parent=1 // pred_fallthru
      _
    // Predicated region
    $region26: #{tpu_custom_call.1} parent=1 // pred_check
      _
    $region27: #{tpu_custom_call.1} parent=1 // pred_check_branch
      %69 = sbr.rel (0) target = $region29
    $region28: #{tpu_custom_call.1} parent=1 // pred_region
      _
    $region29: #{tpu_custom_call.1} parent=1 // pred_fallthru
      _
    // Predicated region
    $region30: #{tpu_custom_call.1} parent=1 // pred_check
      _
    $region31: #{tpu_custom_call.1} parent=1 // pred_check_branch
      %71 = sbr.rel (0) target = $region33
    $region32: #{tpu_custom_call.1} parent=1 // pred_region
      %72 = dma.done [#allocation3], 3072
    $region33: #{tpu_custom_call.1} parent=1 // pred_fallthru
      _
    // Predicated region
    $region34: #{tpu_custom_call.1} parent=1 // pred_check
      _
    $region35: #{tpu_custom_call.1} parent=1 // pred_check_branch
      %74 = sbr.rel (0) target = $region37
    $region36: #{tpu_custom_call.1} parent=1 // pred_region
      %75 = dma.done [#allocation6], 24576
    $region37: #{tpu_custom_call.1} parent=1 // pred_fallthru
      _
    // Predicated region
    $region38: #{tpu_custom_call.1} parent=1 // pred_check
      _
    $region39: #{tpu_custom_call.1} parent=1 // pred_check_branch
      %77 = sbr.rel (0) target = $region41
    $region40: #{tpu_custom_call.1} parent=1 // pred_region
      %78 = dma.done [#allocation6], 1024
    $region41: #{tpu_custom_call.1} parent=1 // pred_fallthru
      _
    // Predicated region
    $region42: #{tpu_custom_call.1} parent=1 // pred_check
      _
    $region43: #{tpu_custom_call.1} parent=1 // pred_check_branch
      %80 = sbr.rel (0) target = $region45
    $region44: #{tpu_custom_call.1} parent=1 // pred_region
      %81 = dma.done [#allocation9], 1024
    $region45: #{tpu_custom_call.1} parent=1 // pred_fallthru
      _
    %v83 = vld [vmem:[#allocation2] sm:$0xff]
    %v84 = vld [vmem:[#allocation2 + $0x8] sm:$0xff]
    %v85 = vld [vmem:[#allocation2 + $0x10] sm:$0xff]
    %v86 = vld [vmem:[#allocation2 + $0x18] sm:$0xff]
    %v87 = vld [vmem:[#allocation2 + $0x20] sm:$0xff]
    %v88 = vld [vmem:[#allocation2 + $0x28] sm:$0xff]
    %v89 = vld [vmem:[#allocation2 + $0x30] sm:$0xff]
    %v90 = vld [vmem:[#allocation2 + $0x38] sm:$0xff]
    %v91 = vld [vmem:[#allocation2 + $0x40] sm:$0xff]
    %v92 = vld [vmem:[#allocation2 + $0x48] sm:$0xff]
    %v93 = vld [vmem:[#allocation2 + $0x50] sm:$0xff]
    %v94 = vld [vmem:[#allocation2 + $0x58] sm:$0xff]
    %v95 = vld [vmem:[#allocation2 + $0x60] sm:$0xff]
    %v96 = vld [vmem:[#allocation2 + $0x68] sm:$0xff]
    %v97 = vld [vmem:[#allocation2 + $0x70] sm:$0xff]
    %v98 = vld [vmem:[#allocation2 + $0x78] sm:$0xff]
    %v99 = vld [vmem:[#allocation2 + $0x80] sm:$0xff]
    %v100 = vld [vmem:[#allocation2 + $0x88] sm:$0xff]
    %v101 = vld [vmem:[#allocation2 + $0x90] sm:$0xff]
    %v102 = vld [vmem:[#allocation2 + $0x98] sm:$0xff]
    %v103 = vld [vmem:[#allocation2 + $0xa0] sm:$0xff]
    %v104 = vld [vmem:[#allocation2 + $0xa8] sm:$0xff]
    %v105 = vld [vmem:[#allocation2 + $0xb0] sm:$0xff]
    %v106 = vld [vmem:[#allocation2 + $0xb8] sm:$0xff]
    %v131 = vcombine.low %v83, %v89
    %v132 = vcombine.high %v83, %v89
    %v133 = vcombine.low %v95, %v101
    %v134 = vcombine.high %v95, %v101
    %v136 = vunpack.c.l.s4 1983009808
    %v137 = vunpack.c.0.s8 %v136
    %v138 = vlaneseq
    %v139 = vshrl.u32 %v138, 7
    %v140 = vsub.s32 %v137, %v139
    %v141 = vrot.slane %v131, %v140
    %v143 = vunpack.c.l.s4 1983009808
    %v144 = vunpack.c.0.s8 %v143
    %v145 = vlaneseq
    %v146 = vshrl.u32 %v145, 7
    %v147 = vsub.s32 %v144, %v146
    %v148 = vrot.slane %v132, %v147
    %v150 = vunpack.c.l.s4 1983009808
    %v151 = vunpack.c.0.s8 %v150
    %v152 = vlaneseq
    %v153 = vshrl.u32 %v152, 7
    %v154 = vsub.s32 %v151, %v153
    %v155 = vrot.slane %v133, %v154
    %v157 = vunpack.c.l.s4 1983009808
    %v158 = vunpack.c.0.s8 %v157
    %v159 = vlaneseq
    %v160 = vshrl.u32 %v159, 7
    %v161 = vsub.s32 %v158, %v160
    %v162 = vrot.slane %v134, %v161
    %v163 = vcombine.low %v141, %v155
    %v164 = vcombine.high %v141, %v155
    %v165 = vcombine.low %v148, %v162
    %v166 = vcombine.high %v148, %v162
    %v167 = vcombine.low %v84, %v90
    %v168 = vcombine.high %v84, %v90
    %v169 = vcombine.low %v96, %v102
    %v170 = vcombine.high %v96, %v102
    %v172 = vunpack.c.l.s4 1983009808
    %v173 = vunpack.c.0.s8 %v172
    %v174 = vlaneseq
    %v175 = vshrl.u32 %v174, 7
    %v176 = vsub.s32 %v173, %v175
    %v177 = vrot.slane %v167, %v176
    %v179 = vunpack.c.l.s4 1983009808
    %v180 = vunpack.c.0.s8 %v179
    %v181 = vlaneseq
    %v182 = vshrl.u32 %v181, 7
    %v183 = vsub.s32 %v180, %v182
    %v184 = vrot.slane %v168, %v183
    %v186 = vunpack.c.l.s4 1983009808
    %v187 = vunpack.c.0.s8 %v186
    %v188 = vlaneseq
    %v189 = vshrl.u32 %v188, 7
    %v190 = vsub.s32 %v187, %v189
    %v191 = vrot.slane %v169, %v190
    %v193 = vunpack.c.l.s4 1983009808
    %v194 = vunpack.c.0.s8 %v193
    %v195 = vlaneseq
    %v196 = vshrl.u32 %v195, 7
    %v197 = vsub.s32 %v194, %v196
    %v198 = vrot.slane %v170, %v197
    %v199 = vcombine.low %v177, %v191
    %v200 = vcombine.high %v177, %v191
    %v201 = vcombine.low %v184, %v198
    %v202 = vcombine.high %v184, %v198
    %v203 = vcombine.low %v85, %v91
    %v204 = vcombine.high %v85, %v91
    %v205 = vcombine.low %v97, %v103
    %v206 = vcombine.high %v97, %v103
    %v208 = vunpack.c.l.s4 1983009808
    %v209 = vunpack.c.0.s8 %v208
    %v210 = vlaneseq
    %v211 = vshrl.u32 %v210, 7
    %v212 = vsub.s32 %v209, %v211
    %v213 = vrot.slane %v203, %v212
    %v215 = vunpack.c.l.s4 1983009808
    %v216 = vunpack.c.0.s8 %v215
    %v217 = vlaneseq
    %v218 = vshrl.u32 %v217, 7
    %v219 = vsub.s32 %v216, %v218
    %v220 = vrot.slane %v204, %v219
    %v222 = vunpack.c.l.s4 1983009808
    %v223 = vunpack.c.0.s8 %v222
    %v224 = vlaneseq
    %v225 = vshrl.u32 %v224, 7
    %v226 = vsub.s32 %v223, %v225
    %v227 = vrot.slane %v205, %v226
    %v229 = vunpack.c.l.s4 1983009808
    %v230 = vunpack.c.0.s8 %v229
    %v231 = vlaneseq
    %v232 = vshrl.u32 %v231, 7
    %v233 = vsub.s32 %v230, %v232
    %v234 = vrot.slane %v206, %v233
    %v235 = vcombine.low %v213, %v227
    %v236 = vcombine.high %v213, %v227
    %v237 = vcombine.low %v220, %v234
    %v238 = vcombine.high %v220, %v234
    %v239 = vcombine.low %v86, %v92
    %v240 = vcombine.high %v86, %v92
    %v241 = vcombine.low %v98, %v104
    %v242 = vcombine.high %v98, %v104
    %v244 = vunpack.c.l.s4 1983009808
    %v245 = vunpack.c.0.s8 %v244
    %v246 = vlaneseq
    %v247 = vshrl.u32 %v246, 7
    %v248 = vsub.s32 %v245, %v247
    %v249 = vrot.slane %v239, %v248
    %v251 = vunpack.c.l.s4 1983009808
    %v252 = vunpack.c.0.s8 %v251
    %v253 = vlaneseq
    %v254 = vshrl.u32 %v253, 7
    %v255 = vsub.s32 %v252, %v254
    %v256 = vrot.slane %v240, %v255
    %v258 = vunpack.c.l.s4 1983009808
    %v259 = vunpack.c.0.s8 %v258
    %v260 = vlaneseq
    %v261 = vshrl.u32 %v260, 7
    %v262 = vsub.s32 %v259, %v261
    %v263 = vrot.slane %v241, %v262
    %v265 = vunpack.c.l.s4 1983009808
    %v266 = vunpack.c.0.s8 %v265
    %v267 = vlaneseq
    %v268 = vshrl.u32 %v267, 7
    %v269 = vsub.s32 %v266, %v268
    %v270 = vrot.slane %v242, %v269
    %v271 = vcombine.low %v249, %v263
    %v272 = vcombine.high %v249, %v263
    %v273 = vcombine.low %v256, %v270
    %v274 = vcombine.high %v256, %v270
    %v275 = vcombine.low %v87, %v93
    %v276 = vcombine.high %v87, %v93
    %v277 = vcombine.low %v99, %v105
    %v278 = vcombine.high %v99, %v105
    %v280 = vunpack.c.l.s4 1983009808
    %v281 = vunpack.c.0.s8 %v280
    %v282 = vlaneseq
    %v283 = vshrl.u32 %v282, 7
    %v284 = vsub.s32 %v281, %v283
    %v285 = vrot.slane %v275, %v284
    %v287 = vunpack.c.l.s4 1983009808
    %v288 = vunpack.c.0.s8 %v287
    %v289 = vlaneseq
    %v290 = vshrl.u32 %v289, 7
    %v291 = vsub.s32 %v288, %v290
    %v292 = vrot.slane %v276, %v291
    %v294 = vunpack.c.l.s4 1983009808
    %v295 = vunpack.c.0.s8 %v294
    %v296 = vlaneseq
    %v297 = vshrl.u32 %v296, 7
    %v298 = vsub.s32 %v295, %v297
    %v299 = vrot.slane %v277, %v298
    %v301 = vunpack.c.l.s4 1983009808
    %v302 = vunpack.c.0.s8 %v301
    %v303 = vlaneseq
    %v304 = vshrl.u32 %v303, 7
    %v305 = vsub.s32 %v302, %v304
    %v306 = vrot.slane %v278, %v305
    %v307 = vcombine.low %v285, %v299
    %v308 = vcombine.high %v285, %v299
    %v309 = vcombine.low %v292, %v306
    %v310 = vcombine.high %v292, %v306
    %v311 = vcombine.low %v88, %v94
    %v312 = vcombine.high %v88, %v94
    %v313 = vcombine.low %v100, %v106
    %v314 = vcombine.high %v100, %v106
    %v316 = vunpack.c.l.s4 1983009808
    %v317 = vunpack.c.0.s8 %v316
    %v318 = vlaneseq
    %v319 = vshrl.u32 %v318, 7
    %v320 = vsub.s32 %v317, %v319
    %v321 = vrot.slane %v311, %v320
    %v323 = vunpack.c.l.s4 1983009808
    %v324 = vunpack.c.0.s8 %v323
    %v325 = vlaneseq
    %v326 = vshrl.u32 %v325, 7
    %v327 = vsub.s32 %v324, %v326
    %v328 = vrot.slane %v312, %v327
    %v330 = vunpack.c.l.s4 1983009808
    %v331 = vunpack.c.0.s8 %v330
    %v332 = vlaneseq
    %v333 = vshrl.u32 %v332, 7
    %v334 = vsub.s32 %v331, %v333
    %v335 = vrot.slane %v313, %v334
    %v337 = vunpack.c.l.s4 1983009808
    %v338 = vunpack.c.0.s8 %v337
    %v339 = vlaneseq
    %v340 = vshrl.u32 %v339, 7
    %v341 = vsub.s32 %v338, %v340
    %v342 = vrot.slane %v314, %v341
    %v343 = vcombine.low %v321, %v335
    %v344 = vcombine.high %v321, %v335
    %v345 = vcombine.low %v328, %v342
    %v346 = vcombine.high %v328, %v342
    %v371 = vpack.c.bf16 %v163, %v163
    %v372 = vpack.c.bf16 %v164, %v164
    %v373 = vpack.c.bf16 %v165, %v165
    %v374 = vpack.c.bf16 %v166, %v166
    %v375 = vpack.c.bf16 %v199, %v199
    %v376 = vpack.c.bf16 %v200, %v200
    %v377 = vpack.c.bf16 %v201, %v201
    %v378 = vpack.c.bf16 %v202, %v202
    %v379 = vpack.c.bf16 %v235, %v235
    %v380 = vpack.c.bf16 %v236, %v236
    %v381 = vpack.c.bf16 %v237, %v237
    %v382 = vpack.c.bf16 %v238, %v238
    %v383 = vpack.c.bf16 %v271, %v271
    %v384 = vpack.c.bf16 %v272, %v272
    %v385 = vpack.c.bf16 %v273, %v273
    %v386 = vpack.c.bf16 %v274, %v274
    %v387 = vpack.c.bf16 %v307, %v307
    %v388 = vpack.c.bf16 %v308, %v308
    %v389 = vpack.c.bf16 %v309, %v309
    %v390 = vpack.c.bf16 %v310, %v310
    %v391 = vpack.c.bf16 %v343, %v343
    %v392 = vpack.c.bf16 %v344, %v344
    %v393 = vpack.c.bf16 %v345, %v345
    %v394 = vpack.c.bf16 %v346, %v346
    %v395 = vld [vmem:[#allocation5] sm:$0xf]
    %v396 = vld [vmem:[#allocation5 + $0x4] sm:$0xf]
    %v397 = vld [vmem:[#allocation5 + $0x8] sm:$0xf]
    %v398 = vld [vmem:[#allocation5 + $0xc] sm:$0xf]
    %v399 = vld [vmem:[#allocation5 + $0x10] sm:$0xf]
    %v400 = vld [vmem:[#allocation5 + $0x14] sm:$0xf]
    %v401 = vld [vmem:[#allocation5 + $0x18] sm:$0xf]
    %v402 = vld [vmem:[#allocation5 + $0x1c] sm:$0xf]
    %v403 = vld [vmem:[#allocation5 + $0x20] sm:$0xf]
    %v404 = vld [vmem:[#allocation5 + $0x24] sm:$0xf]
    %v405 = vld [vmem:[#allocation5 + $0x28] sm:$0xf]
    %v406 = vld [vmem:[#allocation5 + $0x2c] sm:$0xf]
    %v407 = vld [vmem:[#allocation5 + $0x30] sm:$0xf]
    %v408 = vld [vmem:[#allocation5 + $0x34] sm:$0xf]
    %v409 = vld [vmem:[#allocation5 + $0x38] sm:$0xf]
    %v410 = vld [vmem:[#allocation5 + $0x3c] sm:$0xf]
    %v411 = vld [vmem:[#allocation5 + $0x40] sm:$0xf]
    %v412 = vld [vmem:[#allocation5 + $0x44] sm:$0xf]
    %v413 = vld [vmem:[#allocation5 + $0x48] sm:$0xf]
    %v414 = vld [vmem:[#allocation5 + $0x4c] sm:$0xf]
    %v415 = vld [vmem:[#allocation5 + $0x50] sm:$0xf]
    %v416 = vld [vmem:[#allocation5 + $0x54] sm:$0xf]
    %v417 = vld [vmem:[#allocation5 + $0x58] sm:$0xf]
    %v418 = vld [vmem:[#allocation5 + $0x5c] sm:$0xf]
    %v419 = vld [vmem:[#allocation5 + $0x60] sm:$0xf]
    %v420 = vld [vmem:[#allocation5 + $0x64] sm:$0xf]
    %v421 = vld [vmem:[#allocation5 + $0x68] sm:$0xf]
    %v422 = vld [vmem:[#allocation5 + $0x6c] sm:$0xf]
    %v423 = vld [vmem:[#allocation5 + $0x70] sm:$0xf]
    %v424 = vld [vmem:[#allocation5 + $0x74] sm:$0xf]
    %v425 = vld [vmem:[#allocation5 + $0x78] sm:$0xf]
    %v426 = vld [vmem:[#allocation5 + $0x7c] sm:$0xf]
    %v427 = vld [vmem:[#allocation5 + $0x80] sm:$0xf]
    %v428 = vld [vmem:[#allocation5 + $0x84] sm:$0xf]
    %v429 = vld [vmem:[#allocation5 + $0x88] sm:$0xf]
    %v430 = vld [vmem:[#allocation5 + $0x8c] sm:$0xf]
    %v431 = vld [vmem:[#allocation5 + $0x90] sm:$0xf]
    %v432 = vld [vmem:[#allocation5 + $0x94] sm:$0xf]
    %v433 = vld [vmem:[#allocation5 + $0x98] sm:$0xf]
    %v434 = vld [vmem:[#allocation5 + $0x9c] sm:$0xf]
    %v435 = vld [vmem:[#allocation5 + $0xa0] sm:$0xf]
    %v436 = vld [vmem:[#allocation5 + $0xa4] sm:$0xf]
    %v437 = vld [vmem:[#allocation5 + $0xa8] sm:$0xf]
    %v438 = vld [vmem:[#allocation5 + $0xac] sm:$0xf]
    %v439 = vld [vmem:[#allocation5 + $0xb0] sm:$0xf]
    %v440 = vld [vmem:[#allocation5 + $0xb4] sm:$0xf]
    %v441 = vld [vmem:[#allocation5 + $0xb8] sm:$0xf]
    %v442 = vld [vmem:[#allocation5 + $0xbc] sm:$0xf]
    %v443 = vld [vmem:[#allocation5 + $0xc0] sm:$0xf]
    %v444 = vld [vmem:[#allocation5 + $0xc4] sm:$0xf]
    %v445 = vld [vmem:[#allocation5 + $0xc8] sm:$0xf]
    %v446 = vld [vmem:[#allocation5 + $0xcc] sm:$0xf]
    %v447 = vld [vmem:[#allocation5 + $0xd0] sm:$0xf]
    %v448 = vld [vmem:[#allocation5 + $0xd4] sm:$0xf]
    %v449 = vld [vmem:[#allocation5 + $0xd8] sm:$0xf]
    %v450 = vld [vmem:[#allocation5 + $0xdc] sm:$0xf]
    %v451 = vld [vmem:[#allocation5 + $0xe0] sm:$0xf]
    %v452 = vld [vmem:[#allocation5 + $0xe4] sm:$0xf]
    %v453 = vld [vmem:[#allocation5 + $0xe8] sm:$0xf]
    %v454 = vld [vmem:[#allocation5 + $0xec] sm:$0xf]
    %v455 = vld [vmem:[#allocation5 + $0xf0] sm:$0xf]
    %v456 = vld [vmem:[#allocation5 + $0xf4] sm:$0xf]
    %v457 = vld [vmem:[#allocation5 + $0xf8] sm:$0xf]
    %v458 = vld [vmem:[#allocation5 + $0xfc] sm:$0xf]
    %v459 = vld [vmem:[#allocation5 + $0x100] sm:$0xf]
    %v460 = vld [vmem:[#allocation5 + $0x104] sm:$0xf]
    %v461 = vld [vmem:[#allocation5 + $0x108] sm:$0xf]
    %v462 = vld [vmem:[#allocation5 + $0x10c] sm:$0xf]
    %v463 = vld [vmem:[#allocation5 + $0x110] sm:$0xf]
    %v464 = vld [vmem:[#allocation5 + $0x114] sm:$0xf]
    %v465 = vld [vmem:[#allocation5 + $0x118] sm:$0xf]
    %v466 = vld [vmem:[#allocation5 + $0x11c] sm:$0xf]
    %v467 = vld [vmem:[#allocation5 + $0x120] sm:$0xf]
    %v468 = vld [vmem:[#allocation5 + $0x124] sm:$0xf]
    %v469 = vld [vmem:[#allocation5 + $0x128] sm:$0xf]
    %v470 = vld [vmem:[#allocation5 + $0x12c] sm:$0xf]
    %v471 = vld [vmem:[#allocation5 + $0x130] sm:$0xf]
    %v472 = vld [vmem:[#allocation5 + $0x134] sm:$0xf]
    %v473 = vld [vmem:[#allocation5 + $0x138] sm:$0xf]
    %v474 = vld [vmem:[#allocation5 + $0x13c] sm:$0xf]
    %v475 = vld [vmem:[#allocation5 + $0x140] sm:$0xf]
    %v476 = vld [vmem:[#allocation5 + $0x144] sm:$0xf]
    %v477 = vld [vmem:[#allocation5 + $0x148] sm:$0xf]
    %v478 = vld [vmem:[#allocation5 + $0x14c] sm:$0xf]
    %v479 = vld [vmem:[#allocation5 + $0x150] sm:$0xf]
    %v480 = vld [vmem:[#allocation5 + $0x154] sm:$0xf]
    %v481 = vld [vmem:[#allocation5 + $0x158] sm:$0xf]
    %v482 = vld [vmem:[#allocation5 + $0x15c] sm:$0xf]
    %v483 = vld [vmem:[#allocation5 + $0x160] sm:$0xf]
    %v484 = vld [vmem:[#allocation5 + $0x164] sm:$0xf]
    %v485 = vld [vmem:[#allocation5 + $0x168] sm:$0xf]
    %v486 = vld [vmem:[#allocation5 + $0x16c] sm:$0xf]
    %v487 = vld [vmem:[#allocation5 + $0x170] sm:$0xf]
    %v488 = vld [vmem:[#allocation5 + $0x174] sm:$0xf]
    %v489 = vld [vmem:[#allocation5 + $0x178] sm:$0xf]
    %v490 = vld [vmem:[#allocation5 + $0x17c] sm:$0xf]
    %v491 = vld [vmem:[#allocation5 + $0x180] sm:$0xf]
    %v492 = vld [vmem:[#allocation5 + $0x184] sm:$0xf]
    %v493 = vld [vmem:[#allocation5 + $0x188] sm:$0xf]
    %v494 = vld [vmem:[#allocation5 + $0x18c] sm:$0xf]
    %v495 = vld [vmem:[#allocation5 + $0x190] sm:$0xf]
    %v496 = vld [vmem:[#allocation5 + $0x194] sm:$0xf]
    %v497 = vld [vmem:[#allocation5 + $0x198] sm:$0xf]
    %v498 = vld [vmem:[#allocation5 + $0x19c] sm:$0xf]
    %v499 = vld [vmem:[#allocation5 + $0x1a0] sm:$0xf]
    %v500 = vld [vmem:[#allocation5 + $0x1a4] sm:$0xf]
    %v501 = vld [vmem:[#allocation5 + $0x1a8] sm:$0xf]
    %v502 = vld [vmem:[#allocation5 + $0x1ac] sm:$0xf]
    %v503 = vld [vmem:[#allocation5 + $0x1b0] sm:$0xf]
    %v504 = vld [vmem:[#allocation5 + $0x1b4] sm:$0xf]
    %v505 = vld [vmem:[#allocation5 + $0x1b8] sm:$0xf]
    %v506 = vld [vmem:[#allocation5 + $0x1bc] sm:$0xf]
    %v507 = vld [vmem:[#allocation5 + $0x1c0] sm:$0xf]
    %v508 = vld [vmem:[#allocation5 + $0x1c4] sm:$0xf]
    %v509 = vld [vmem:[#allocation5 + $0x1c8] sm:$0xf]
    %v510 = vld [vmem:[#allocation5 + $0x1cc] sm:$0xf]
    %v511 = vld [vmem:[#allocation5 + $0x1d0] sm:$0xf]
    %v512 = vld [vmem:[#allocation5 + $0x1d4] sm:$0xf]
    %v513 = vld [vmem:[#allocation5 + $0x1d8] sm:$0xf]
    %v514 = vld [vmem:[#allocation5 + $0x1dc] sm:$0xf]
    %v515 = vld [vmem:[#allocation5 + $0x1e0] sm:$0xf]
    %v516 = vld [vmem:[#allocation5 + $0x1e4] sm:$0xf]
    %v517 = vld [vmem:[#allocation5 + $0x1e8] sm:$0xf]
    %v518 = vld [vmem:[#allocation5 + $0x1ec] sm:$0xf]
    %v519 = vld [vmem:[#allocation5 + $0x1f0] sm:$0xf]
    %v520 = vld [vmem:[#allocation5 + $0x1f4] sm:$0xf]
    %v521 = vld [vmem:[#allocation5 + $0x1f8] sm:$0xf]
    %v522 = vld [vmem:[#allocation5 + $0x1fc] sm:$0xf]
    %v523 = vld [vmem:[#allocation5 + $0x200] sm:$0xf]
    %v524 = vld [vmem:[#allocation5 + $0x204] sm:$0xf]
    %v525 = vld [vmem:[#allocation5 + $0x208] sm:$0xf]
    %v526 = vld [vmem:[#allocation5 + $0x20c] sm:$0xf]
    %v527 = vld [vmem:[#allocation5 + $0x210] sm:$0xf]
    %v528 = vld [vmem:[#allocation5 + $0x214] sm:$0xf]
    %v529 = vld [vmem:[#allocation5 + $0x218] sm:$0xf]
    %v530 = vld [vmem:[#allocation5 + $0x21c] sm:$0xf]
    %v531 = vld [vmem:[#allocation5 + $0x220] sm:$0xf]
    %v532 = vld [vmem:[#allocation5 + $0x224] sm:$0xf]
    %v533 = vld [vmem:[#allocation5 + $0x228] sm:$0xf]
    %v534 = vld [vmem:[#allocation5 + $0x22c] sm:$0xf]
    %v535 = vld [vmem:[#allocation5 + $0x230] sm:$0xf]
    %v536 = vld [vmem:[#allocation5 + $0x234] sm:$0xf]
    %v537 = vld [vmem:[#allocation5 + $0x238] sm:$0xf]
    %v538 = vld [vmem:[#allocation5 + $0x23c] sm:$0xf]
    %v539 = vld [vmem:[#allocation5 + $0x240] sm:$0xf]
    %v540 = vld [vmem:[#allocation5 + $0x244] sm:$0xf]
    %v541 = vld [vmem:[#allocation5 + $0x248] sm:$0xf]
    %v542 = vld [vmem:[#allocation5 + $0x24c] sm:$0xf]
    %v543 = vld [vmem:[#allocation5 + $0x250] sm:$0xf]
    %v544 = vld [vmem:[#allocation5 + $0x254] sm:$0xf]
    %v545 = vld [vmem:[#allocation5 + $0x258] sm:$0xf]
    %v546 = vld [vmem:[#allocation5 + $0x25c] sm:$0xf]
    %v547 = vld [vmem:[#allocation5 + $0x260] sm:$0xf]
    %v548 = vld [vmem:[#allocation5 + $0x264] sm:$0xf]
    %v549 = vld [vmem:[#allocation5 + $0x268] sm:$0xf]
    %v550 = vld [vmem:[#allocation5 + $0x26c] sm:$0xf]
    %v551 = vld [vmem:[#allocation5 + $0x270] sm:$0xf]
    %v552 = vld [vmem:[#allocation5 + $0x274] sm:$0xf]
    %v553 = vld [vmem:[#allocation5 + $0x278] sm:$0xf]
    %v554 = vld [vmem:[#allocation5 + $0x27c] sm:$0xf]
    %v555 = vld [vmem:[#allocation5 + $0x280] sm:$0xf]
    %v556 = vld [vmem:[#allocation5 + $0x284] sm:$0xf]
    %v557 = vld [vmem:[#allocation5 + $0x288] sm:$0xf]
    %v558 = vld [vmem:[#allocation5 + $0x28c] sm:$0xf]
    %v559 = vld [vmem:[#allocation5 + $0x290] sm:$0xf]
    %v560 = vld [vmem:[#allocation5 + $0x294] sm:$0xf]
    %v561 = vld [vmem:[#allocation5 + $0x298] sm:$0xf]
    %v562 = vld [vmem:[#allocation5 + $0x29c] sm:$0xf]
    %v563 = vld [vmem:[#allocation5 + $0x2a0] sm:$0xf]
    %v564 = vld [vmem:[#allocation5 + $0x2a4] sm:$0xf]
    %v565 = vld [vmem:[#allocation5 + $0x2a8] sm:$0xf]
    %v566 = vld [vmem:[#allocation5 + $0x2ac] sm:$0xf]
    %v567 = vld [vmem:[#allocation5 + $0x2b0] sm:$0xf]
    %v568 = vld [vmem:[#allocation5 + $0x2b4] sm:$0xf]
    %v569 = vld [vmem:[#allocation5 + $0x2b8] sm:$0xf]
    %v570 = vld [vmem:[#allocation5 + $0x2bc] sm:$0xf]
    %v571 = vld [vmem:[#allocation5 + $0x2c0] sm:$0xf]
    %v572 = vld [vmem:[#allocation5 + $0x2c4] sm:$0xf]
    %v573 = vld [vmem:[#allocation5 + $0x2c8] sm:$0xf]
    %v574 = vld [vmem:[#allocation5 + $0x2cc] sm:$0xf]
    %v575 = vld [vmem:[#allocation5 + $0x2d0] sm:$0xf]
    %v576 = vld [vmem:[#allocation5 + $0x2d4] sm:$0xf]
    %v577 = vld [vmem:[#allocation5 + $0x2d8] sm:$0xf]
    %v578 = vld [vmem:[#allocation5 + $0x2dc] sm:$0xf]
    %v579 = vld [vmem:[#allocation5 + $0x2e0] sm:$0xf]
    %v580 = vld [vmem:[#allocation5 + $0x2e4] sm:$0xf]
    %v581 = vld [vmem:[#allocation5 + $0x2e8] sm:$0xf]
    %v582 = vld [vmem:[#allocation5 + $0x2ec] sm:$0xf]
    %v583 = vld [vmem:[#allocation5 + $0x2f0] sm:$0xf]
    %v584 = vld [vmem:[#allocation5 + $0x2f4] sm:$0xf]
    %v585 = vld [vmem:[#allocation5 + $0x2f8] sm:$0xf]
    %v586 = vld [vmem:[#allocation5 + $0x2fc] sm:$0xf]
    %v587 = vld [vmem:[#allocation5 + $0x300] sm:$0xf]
    %v588 = vld [vmem:[#allocation5 + $0x304] sm:$0xf]
    %v589 = vld [vmem:[#allocation5 + $0x308] sm:$0xf]
    %v590 = vld [vmem:[#allocation5 + $0x30c] sm:$0xf]
    %v591 = vld [vmem:[#allocation5 + $0x310] sm:$0xf]
    %v592 = vld [vmem:[#allocation5 + $0x314] sm:$0xf]
    %v593 = vld [vmem:[#allocation5 + $0x318] sm:$0xf]
    %v594 = vld [vmem:[#allocation5 + $0x31c] sm:$0xf]
    %v595 = vld [vmem:[#allocation5 + $0x320] sm:$0xf]
    %v596 = vld [vmem:[#allocation5 + $0x324] sm:$0xf]
    %v597 = vld [vmem:[#allocation5 + $0x328] sm:$0xf]
    %v598 = vld [vmem:[#allocation5 + $0x32c] sm:$0xf]
    %v599 = vld [vmem:[#allocation5 + $0x330] sm:$0xf]
    %v600 = vld [vmem:[#allocation5 + $0x334] sm:$0xf]
    %v601 = vld [vmem:[#allocation5 + $0x338] sm:$0xf]
    %v602 = vld [vmem:[#allocation5 + $0x33c] sm:$0xf]
    %v603 = vld [vmem:[#allocation5 + $0x340] sm:$0xf]
    %v604 = vld [vmem:[#allocation5 + $0x344] sm:$0xf]
    %v605 = vld [vmem:[#allocation5 + $0x348] sm:$0xf]
    %v606 = vld [vmem:[#allocation5 + $0x34c] sm:$0xf]
    %v607 = vld [vmem:[#allocation5 + $0x350] sm:$0xf]
    %v608 = vld [vmem:[#allocation5 + $0x354] sm:$0xf]
    %v609 = vld [vmem:[#allocation5 + $0x358] sm:$0xf]
    %v610 = vld [vmem:[#allocation5 + $0x35c] sm:$0xf]
    %v611 = vld [vmem:[#allocation5 + $0x360] sm:$0xf]
    %v612 = vld [vmem:[#allocation5 + $0x364] sm:$0xf]
    %v613 = vld [vmem:[#allocation5 + $0x368] sm:$0xf]
    %v614 = vld [vmem:[#allocation5 + $0x36c] sm:$0xf]
    %v615 = vld [vmem:[#allocation5 + $0x370] sm:$0xf]
    %v616 = vld [vmem:[#allocation5 + $0x374] sm:$0xf]
    %v617 = vld [vmem:[#allocation5 + $0x378] sm:$0xf]
    %v618 = vld [vmem:[#allocation5 + $0x37c] sm:$0xf]
    %v619 = vld [vmem:[#allocation5 + $0x380] sm:$0xf]
    %v620 = vld [vmem:[#allocation5 + $0x384] sm:$0xf]
    %v621 = vld [vmem:[#allocation5 + $0x388] sm:$0xf]
    %v622 = vld [vmem:[#allocation5 + $0x38c] sm:$0xf]
    %v623 = vld [vmem:[#allocation5 + $0x390] sm:$0xf]
    %v624 = vld [vmem:[#allocation5 + $0x394] sm:$0xf]
    %v625 = vld [vmem:[#allocation5 + $0x398] sm:$0xf]
    %v626 = vld [vmem:[#allocation5 + $0x39c] sm:$0xf]
    %v627 = vld [vmem:[#allocation5 + $0x3a0] sm:$0xf]
    %v628 = vld [vmem:[#allocation5 + $0x3a4] sm:$0xf]
    %v629 = vld [vmem:[#allocation5 + $0x3a8] sm:$0xf]
    %v630 = vld [vmem:[#allocation5 + $0x3ac] sm:$0xf]
    %v631 = vld [vmem:[#allocation5 + $0x3b0] sm:$0xf]
    %v632 = vld [vmem:[#allocation5 + $0x3b4] sm:$0xf]
    %v633 = vld [vmem:[#allocation5 + $0x3b8] sm:$0xf]
    %v634 = vld [vmem:[#allocation5 + $0x3bc] sm:$0xf]
    %v635 = vld [vmem:[#allocation5 + $0x3c0] sm:$0xf]
    %v636 = vld [vmem:[#allocation5 + $0x3c4] sm:$0xf]
    %v637 = vld [vmem:[#allocation5 + $0x3c8] sm:$0xf]
    %v638 = vld [vmem:[#allocation5 + $0x3cc] sm:$0xf]
    %v639 = vld [vmem:[#allocation5 + $0x3d0] sm:$0xf]
    %v640 = vld [vmem:[#allocation5 + $0x3d4] sm:$0xf]
    %v641 = vld [vmem:[#allocation5 + $0x3d8] sm:$0xf]
    %v642 = vld [vmem:[#allocation5 + $0x3dc] sm:$0xf]
    %v643 = vld [vmem:[#allocation5 + $0x3e0] sm:$0xf]
    %v644 = vld [vmem:[#allocation5 + $0x3e4] sm:$0xf]
    %v645 = vld [vmem:[#allocation5 + $0x3e8] sm:$0xf]
    %v646 = vld [vmem:[#allocation5 + $0x3ec] sm:$0xf]
    %v647 = vld [vmem:[#allocation5 + $0x3f0] sm:$0xf]
    %v648 = vld [vmem:[#allocation5 + $0x3f4] sm:$0xf]
    %v649 = vld [vmem:[#allocation5 + $0x3f8] sm:$0xf]
    %v650 = vld [vmem:[#allocation5 + $0x3fc] sm:$0xf]
    %v651 = vld [vmem:[#allocation5 + $0x400] sm:$0xf]
    %v652 = vld [vmem:[#allocation5 + $0x404] sm:$0xf]
    %v653 = vld [vmem:[#allocation5 + $0x408] sm:$0xf]
    %v654 = vld [vmem:[#allocation5 + $0x40c] sm:$0xf]
    %v655 = vld [vmem:[#allocation5 + $0x410] sm:$0xf]
    %v656 = vld [vmem:[#allocation5 + $0x414] sm:$0xf]
    %v657 = vld [vmem:[#allocation5 + $0x418] sm:$0xf]
    %v658 = vld [vmem:[#allocation5 + $0x41c] sm:$0xf]
    %v659 = vld [vmem:[#allocation5 + $0x420] sm:$0xf]
    %v660 = vld [vmem:[#allocation5 + $0x424] sm:$0xf]
    %v661 = vld [vmem:[#allocation5 + $0x428] sm:$0xf]
    %v662 = vld [vmem:[#allocation5 + $0x42c] sm:$0xf]
    %v663 = vld [vmem:[#allocation5 + $0x430] sm:$0xf]
    %v664 = vld [vmem:[#allocation5 + $0x434] sm:$0xf]
    %v665 = vld [vmem:[#allocation5 + $0x438] sm:$0xf]
    %v666 = vld [vmem:[#allocation5 + $0x43c] sm:$0xf]
    %v667 = vld [vmem:[#allocation5 + $0x440] sm:$0xf]
    %v668 = vld [vmem:[#allocation5 + $0x444] sm:$0xf]
    %v669 = vld [vmem:[#allocation5 + $0x448] sm:$0xf]
    %v670 = vld [vmem:[#allocation5 + $0x44c] sm:$0xf]
    %v671 = vld [vmem:[#allocation5 + $0x450] sm:$0xf]
    %v672 = vld [vmem:[#allocation5 + $0x454] sm:$0xf]
    %v673 = vld [vmem:[#allocation5 + $0x458] sm:$0xf]
    %v674 = vld [vmem:[#allocation5 + $0x45c] sm:$0xf]
    %v675 = vld [vmem:[#allocation5 + $0x460] sm:$0xf]
    %v676 = vld [vmem:[#allocation5 + $0x464] sm:$0xf]
    %v677 = vld [vmem:[#allocation5 + $0x468] sm:$0xf]
    %v678 = vld [vmem:[#allocation5 + $0x46c] sm:$0xf]
    %v679 = vld [vmem:[#allocation5 + $0x470] sm:$0xf]
    %v680 = vld [vmem:[#allocation5 + $0x474] sm:$0xf]
    %v681 = vld [vmem:[#allocation5 + $0x478] sm:$0xf]
    %v682 = vld [vmem:[#allocation5 + $0x47c] sm:$0xf]
    %v683 = vld [vmem:[#allocation5 + $0x480] sm:$0xf]
    %v684 = vld [vmem:[#allocation5 + $0x484] sm:$0xf]
    %v685 = vld [vmem:[#allocation5 + $0x488] sm:$0xf]
    %v686 = vld [vmem:[#allocation5 + $0x48c] sm:$0xf]
    %v687 = vld [vmem:[#allocation5 + $0x490] sm:$0xf]
    %v688 = vld [vmem:[#allocation5 + $0x494] sm:$0xf]
    %v689 = vld [vmem:[#allocation5 + $0x498] sm:$0xf]
    %v690 = vld [vmem:[#allocation5 + $0x49c] sm:$0xf]
    %v691 = vld [vmem:[#allocation5 + $0x4a0] sm:$0xf]
    %v692 = vld [vmem:[#allocation5 + $0x4a4] sm:$0xf]
    %v693 = vld [vmem:[#allocation5 + $0x4a8] sm:$0xf]
    %v694 = vld [vmem:[#allocation5 + $0x4ac] sm:$0xf]
    %v695 = vld [vmem:[#allocation5 + $0x4b0] sm:$0xf]
    %v696 = vld [vmem:[#allocation5 + $0x4b4] sm:$0xf]
    %v697 = vld [vmem:[#allocation5 + $0x4b8] sm:$0xf]
    %v698 = vld [vmem:[#allocation5 + $0x4bc] sm:$0xf]
    %v699 = vld [vmem:[#allocation5 + $0x4c0] sm:$0xf]
    %v700 = vld [vmem:[#allocation5 + $0x4c4] sm:$0xf]
    %v701 = vld [vmem:[#allocation5 + $0x4c8] sm:$0xf]
    %v702 = vld [vmem:[#allocation5 + $0x4cc] sm:$0xf]
    %v703 = vld [vmem:[#allocation5 + $0x4d0] sm:$0xf]
    %v704 = vld [vmem:[#allocation5 + $0x4d4] sm:$0xf]
    %v705 = vld [vmem:[#allocation5 + $0x4d8] sm:$0xf]
    %v706 = vld [vmem:[#allocation5 + $0x4dc] sm:$0xf]
    %v707 = vld [vmem:[#allocation5 + $0x4e0] sm:$0xf]
    %v708 = vld [vmem:[#allocation5 + $0x4e4] sm:$0xf]
    %v709 = vld [vmem:[#allocation5 + $0x4e8] sm:$0xf]
    %v710 = vld [vmem:[#allocation5 + $0x4ec] sm:$0xf]
    %v711 = vld [vmem:[#allocation5 + $0x4f0] sm:$0xf]
    %v712 = vld [vmem:[#allocation5 + $0x4f4] sm:$0xf]
    %v713 = vld [vmem:[#allocation5 + $0x4f8] sm:$0xf]
    %v714 = vld [vmem:[#allocation5 + $0x4fc] sm:$0xf]
    %v715 = vld [vmem:[#allocation5 + $0x500] sm:$0xf]
    %v716 = vld [vmem:[#allocation5 + $0x504] sm:$0xf]
    %v717 = vld [vmem:[#allocation5 + $0x508] sm:$0xf]
    %v718 = vld [vmem:[#allocation5 + $0x50c] sm:$0xf]
    %v719 = vld [vmem:[#allocation5 + $0x510] sm:$0xf]
    %v720 = vld [vmem:[#allocation5 + $0x514] sm:$0xf]
    %v721 = vld [vmem:[#allocation5 + $0x518] sm:$0xf]
    %v722 = vld [vmem:[#allocation5 + $0x51c] sm:$0xf]
    %v723 = vld [vmem:[#allocation5 + $0x520] sm:$0xf]
    %v724 = vld [vmem:[#allocation5 + $0x524] sm:$0xf]
    %v725 = vld [vmem:[#allocation5 + $0x528] sm:$0xf]
    %v726 = vld [vmem:[#allocation5 + $0x52c] sm:$0xf]
    %v727 = vld [vmem:[#allocation5 + $0x530] sm:$0xf]
    %v728 = vld [vmem:[#allocation5 + $0x534] sm:$0xf]
    %v729 = vld [vmem:[#allocation5 + $0x538] sm:$0xf]
    %v730 = vld [vmem:[#allocation5 + $0x53c] sm:$0xf]
    %v731 = vld [vmem:[#allocation5 + $0x540] sm:$0xf]
    %v732 = vld [vmem:[#allocation5 + $0x544] sm:$0xf]
    %v733 = vld [vmem:[#allocation5 + $0x548] sm:$0xf]
    %v734 = vld [vmem:[#allocation5 + $0x54c] sm:$0xf]
    %v735 = vld [vmem:[#allocation5 + $0x550] sm:$0xf]
    %v736 = vld [vmem:[#allocation5 + $0x554] sm:$0xf]
    %v737 = vld [vmem:[#allocation5 + $0x558] sm:$0xf]
    %v738 = vld [vmem:[#allocation5 + $0x55c] sm:$0xf]
    %v739 = vld [vmem:[#allocation5 + $0x560] sm:$0xf]
    %v740 = vld [vmem:[#allocation5 + $0x564] sm:$0xf]
    %v741 = vld [vmem:[#allocation5 + $0x568] sm:$0xf]
    %v742 = vld [vmem:[#allocation5 + $0x56c] sm:$0xf]
    %v743 = vld [vmem:[#allocation5 + $0x570] sm:$0xf]
    %v744 = vld [vmem:[#allocation5 + $0x574] sm:$0xf]
    %v745 = vld [vmem:[#allocation5 + $0x578] sm:$0xf]
    %v746 = vld [vmem:[#allocation5 + $0x57c] sm:$0xf]
    %v747 = vld [vmem:[#allocation5 + $0x580] sm:$0xf]
    %v748 = vld [vmem:[#allocation5 + $0x584] sm:$0xf]
    %v749 = vld [vmem:[#allocation5 + $0x588] sm:$0xf]
    %v750 = vld [vmem:[#allocation5 + $0x58c] sm:$0xf]
    %v751 = vld [vmem:[#allocation5 + $0x590] sm:$0xf]
    %v752 = vld [vmem:[#allocation5 + $0x594] sm:$0xf]
    %v753 = vld [vmem:[#allocation5 + $0x598] sm:$0xf]
    %v754 = vld [vmem:[#allocation5 + $0x59c] sm:$0xf]
    %v755 = vld [vmem:[#allocation5 + $0x5a0] sm:$0xf]
    %v756 = vld [vmem:[#allocation5 + $0x5a4] sm:$0xf]
    %v757 = vld [vmem:[#allocation5 + $0x5a8] sm:$0xf]
    %v758 = vld [vmem:[#allocation5 + $0x5ac] sm:$0xf]
    %v759 = vld [vmem:[#allocation5 + $0x5b0] sm:$0xf]
    %v760 = vld [vmem:[#allocation5 + $0x5b4] sm:$0xf]
    %v761 = vld [vmem:[#allocation5 + $0x5b8] sm:$0xf]
    %v762 = vld [vmem:[#allocation5 + $0x5bc] sm:$0xf]
    %v763 = vld [vmem:[#allocation5 + $0x5c0] sm:$0xf]
    %v764 = vld [vmem:[#allocation5 + $0x5c4] sm:$0xf]
    %v765 = vld [vmem:[#allocation5 + $0x5c8] sm:$0xf]
    %v766 = vld [vmem:[#allocation5 + $0x5cc] sm:$0xf]
    %v767 = vld [vmem:[#allocation5 + $0x5d0] sm:$0xf]
    %v768 = vld [vmem:[#allocation5 + $0x5d4] sm:$0xf]
    %v769 = vld [vmem:[#allocation5 + $0x5d8] sm:$0xf]
    %v770 = vld [vmem:[#allocation5 + $0x5dc] sm:$0xf]
    %v771 = vld [vmem:[#allocation5 + $0x5e0] sm:$0xf]
    %v772 = vld [vmem:[#allocation5 + $0x5e4] sm:$0xf]
    %v773 = vld [vmem:[#allocation5 + $0x5e8] sm:$0xf]
    %v774 = vld [vmem:[#allocation5 + $0x5ec] sm:$0xf]
    %v775 = vld [vmem:[#allocation5 + $0x5f0] sm:$0xf]
    %v776 = vld [vmem:[#allocation5 + $0x5f4] sm:$0xf]
    %v777 = vld [vmem:[#allocation5 + $0x5f8] sm:$0xf]
    %v778 = vld [vmem:[#allocation5 + $0x5fc] sm:$0xf]
    %v779 = vld [vmem:[%s2] sm:$0x1]
    %v781 = vlaneseq
    %v782 = vshrl.u32 %v781, 7
    %v783 = vsub.s32 0, %v782
    %v784 = vrot.slane %v779, %v783
    %v1170 = vunpack.c.l.b16 %v395
    %v1171 = vunpack.c.l.b16 %v396
    %v1172 = vunpack.c.l.b16 %v397
    %v1173 = vunpack.c.l.b16 %v398
    %v1174 = vunpack.c.l.b16 %v399
    %v1175 = vunpack.c.l.b16 %v400
    %v1176 = vunpack.c.l.b16 %v401
    %v1177 = vunpack.c.l.b16 %v402
    %v1178 = vunpack.c.l.b16 %v403
    %v1179 = vunpack.c.l.b16 %v404
    %v1180 = vunpack.c.l.b16 %v405
    %v1181 = vunpack.c.l.b16 %v406
    %v1182 = vunpack.c.l.b16 %v407
    %v1183 = vunpack.c.l.b16 %v408
    %v1184 = vunpack.c.l.b16 %v409
    %v1185 = vunpack.c.l.b16 %v410
    %v1186 = vunpack.c.l.b16 %v411
    %v1187 = vunpack.c.l.b16 %v412
    %v1188 = vunpack.c.l.b16 %v413
    %v1189 = vunpack.c.l.b16 %v414
    %v1190 = vunpack.c.l.b16 %v415
    %v1191 = vunpack.c.l.b16 %v416
    %v1192 = vunpack.c.l.b16 %v417
    %v1193 = vunpack.c.l.b16 %v418
    %v1194 = vunpack.c.l.b16 %v419
    %v1195 = vunpack.c.l.b16 %v420
    %v1196 = vunpack.c.l.b16 %v421
    %v1197 = vunpack.c.l.b16 %v422
    %v1198 = vunpack.c.l.b16 %v423
    %v1199 = vunpack.c.l.b16 %v424
    %v1200 = vunpack.c.l.b16 %v425
    %v1201 = vunpack.c.l.b16 %v426
    %v1202 = vunpack.c.l.b16 %v427
    %v1203 = vunpack.c.l.b16 %v428
    %v1204 = vunpack.c.l.b16 %v429
    %v1205 = vunpack.c.l.b16 %v430
    %v1206 = vunpack.c.l.b16 %v431
    %v1207 = vunpack.c.l.b16 %v432
    %v1208 = vunpack.c.l.b16 %v433
    %v1209 = vunpack.c.l.b16 %v434
    %v1210 = vunpack.c.l.b16 %v435
    %v1211 = vunpack.c.l.b16 %v436
    %v1212 = vunpack.c.l.b16 %v437
    %v1213 = vunpack.c.l.b16 %v438
    %v1214 = vunpack.c.l.b16 %v439
    %v1215 = vunpack.c.l.b16 %v440
    %v1216 = vunpack.c.l.b16 %v441
    %v1217 = vunpack.c.l.b16 %v442
    %v1218 = vunpack.c.l.b16 %v443
    %v1219 = vunpack.c.l.b16 %v444
    %v1220 = vunpack.c.l.b16 %v445
    %v1221 = vunpack.c.l.b16 %v446
    %v1222 = vunpack.c.l.b16 %v447
    %v1223 = vunpack.c.l.b16 %v448
    %v1224 = vunpack.c.l.b16 %v449
    %v1225 = vunpack.c.l.b16 %v450
    %v1226 = vunpack.c.l.b16 %v451
    %v1227 = vunpack.c.l.b16 %v452
    %v1228 = vunpack.c.l.b16 %v453
    %v1229 = vunpack.c.l.b16 %v454
    %v1230 = vunpack.c.l.b16 %v455
    %v1231 = vunpack.c.l.b16 %v456
    %v1232 = vunpack.c.l.b16 %v457
    %v1233 = vunpack.c.l.b16 %v458
    %v1234 = vunpack.c.l.b16 %v459
    %v1235 = vunpack.c.l.b16 %v460
    %v1236 = vunpack.c.l.b16 %v461
    %v1237 = vunpack.c.l.b16 %v462
    %v1238 = vunpack.c.l.b16 %v463
    %v1239 = vunpack.c.l.b16 %v464
    %v1240 = vunpack.c.l.b16 %v465
    %v1241 = vunpack.c.l.b16 %v466
    %v1242 = vunpack.c.l.b16 %v467
    %v1243 = vunpack.c.l.b16 %v468
    %v1244 = vunpack.c.l.b16 %v469
    %v1245 = vunpack.c.l.b16 %v470
    %v1246 = vunpack.c.l.b16 %v471
    %v1247 = vunpack.c.l.b16 %v472
    %v1248 = vunpack.c.l.b16 %v473
    %v1249 = vunpack.c.l.b16 %v474
    %v1250 = vunpack.c.l.b16 %v475
    %v1251 = vunpack.c.l.b16 %v476
    %v1252 = vunpack.c.l.b16 %v477
    %v1253 = vunpack.c.l.b16 %v478
    %v1254 = vunpack.c.l.b16 %v479
    %v1255 = vunpack.c.l.b16 %v480
    %v1256 = vunpack.c.l.b16 %v481
    %v1257 = vunpack.c.l.b16 %v482
    %v1258 = vunpack.c.l.b16 %v483
    %v1259 = vunpack.c.l.b16 %v484
    %v1260 = vunpack.c.l.b16 %v485
    %v1261 = vunpack.c.l.b16 %v486
    %v1262 = vunpack.c.l.b16 %v487
    %v1263 = vunpack.c.l.b16 %v488
    %v1264 = vunpack.c.l.b16 %v489
    %v1265 = vunpack.c.l.b16 %v490
    %v1266 = vunpack.c.l.b16 %v491
    %v1267 = vunpack.c.l.b16 %v492
    %v1268 = vunpack.c.l.b16 %v493
    %v1269 = vunpack.c.l.b16 %v494
    %v1270 = vunpack.c.l.b16 %v495
    %v1271 = vunpack.c.l.b16 %v496
    %v1272 = vunpack.c.l.b16 %v497
    %v1273 = vunpack.c.l.b16 %v498
    %v1274 = vunpack.c.l.b16 %v499
    %v1275 = vunpack.c.l.b16 %v500
    %v1276 = vunpack.c.l.b16 %v501
    %v1277 = vunpack.c.l.b16 %v502
    %v1278 = vunpack.c.l.b16 %v503
    %v1279 = vunpack.c.l.b16 %v504
    %v1280 = vunpack.c.l.b16 %v505
    %v1281 = vunpack.c.l.b16 %v506
    %v1282 = vunpack.c.l.b16 %v507
    %v1283 = vunpack.c.l.b16 %v508
    %v1284 = vunpack.c.l.b16 %v509
    %v1285 = vunpack.c.l.b16 %v510
    %v1286 = vunpack.c.l.b16 %v511
    %v1287 = vunpack.c.l.b16 %v512
    %v1288 = vunpack.c.l.b16 %v513
    %v1289 = vunpack.c.l.b16 %v514
    %v1290 = vunpack.c.l.b16 %v515
    %v1291 = vunpack.c.l.b16 %v516
    %v1292 = vunpack.c.l.b16 %v517
    %v1293 = vunpack.c.l.b16 %v518
    %v1294 = vunpack.c.l.b16 %v519
    %v1295 = vunpack.c.l.b16 %v520
    %v1296 = vunpack.c.l.b16 %v521
    %v1297 = vunpack.c.l.b16 %v522
    %v1298 = vunpack.c.l.b16 %v523
    %v1299 = vunpack.c.l.b16 %v524
    %v1300 = vunpack.c.l.b16 %v525
    %v1301 = vunpack.c.l.b16 %v526
    %v1302 = vunpack.c.l.b16 %v527
    %v1303 = vunpack.c.l.b16 %v528
    %v1304 = vunpack.c.l.b16 %v529
    %v1305 = vunpack.c.l.b16 %v530
    %v1306 = vunpack.c.l.b16 %v531
    %v1307 = vunpack.c.l.b16 %v532
    %v1308 = vunpack.c.l.b16 %v533
    %v1309 = vunpack.c.l.b16 %v534
    %v1310 = vunpack.c.l.b16 %v535
    %v1311 = vunpack.c.l.b16 %v536
    %v1312 = vunpack.c.l.b16 %v537
    %v1313 = vunpack.c.l.b16 %v538
    %v1314 = vunpack.c.l.b16 %v539
    %v1315 = vunpack.c.l.b16 %v540
    %v1316 = vunpack.c.l.b16 %v541
    %v1317 = vunpack.c.l.b16 %v542
    %v1318 = vunpack.c.l.b16 %v543
    %v1319 = vunpack.c.l.b16 %v544
    %v1320 = vunpack.c.l.b16 %v545
    %v1321 = vunpack.c.l.b16 %v546
    %v1322 = vunpack.c.l.b16 %v547
    %v1323 = vunpack.c.l.b16 %v548
    %v1324 = vunpack.c.l.b16 %v549
    %v1325 = vunpack.c.l.b16 %v550
    %v1326 = vunpack.c.l.b16 %v551
    %v1327 = vunpack.c.l.b16 %v552
    %v1328 = vunpack.c.l.b16 %v553
    %v1329 = vunpack.c.l.b16 %v554
    %v1330 = vunpack.c.l.b16 %v555
    %v1331 = vunpack.c.l.b16 %v556
    %v1332 = vunpack.c.l.b16 %v557
    %v1333 = vunpack.c.l.b16 %v558
    %v1334 = vunpack.c.l.b16 %v559
    %v1335 = vunpack.c.l.b16 %v560
    %v1336 = vunpack.c.l.b16 %v561
    %v1337 = vunpack.c.l.b16 %v562
    %v1338 = vunpack.c.l.b16 %v563
    %v1339 = vunpack.c.l.b16 %v564
    %v1340 = vunpack.c.l.b16 %v565
    %v1341 = vunpack.c.l.b16 %v566
    %v1342 = vunpack.c.l.b16 %v567
    %v1343 = vunpack.c.l.b16 %v568
    %v1344 = vunpack.c.l.b16 %v569
    %v1345 = vunpack.c.l.b16 %v570
    %v1346 = vunpack.c.l.b16 %v571
    %v1347 = vunpack.c.l.b16 %v572
    %v1348 = vunpack.c.l.b16 %v573
    %v1349 = vunpack.c.l.b16 %v574
    %v1350 = vunpack.c.l.b16 %v575
    %v1351 = vunpack.c.l.b16 %v576
    %v1352 = vunpack.c.l.b16 %v577
    %v1353 = vunpack.c.l.b16 %v578
    %v1354 = vunpack.c.l.b16 %v579
    %v1355 = vunpack.c.l.b16 %v580
    %v1356 = vunpack.c.l.b16 %v581
    %v1357 = vunpack.c.l.b16 %v582
    %v1358 = vunpack.c.l.b16 %v583
    %v1359 = vunpack.c.l.b16 %v584
    %v1360 = vunpack.c.l.b16 %v585
    %v1361 = vunpack.c.l.b16 %v586
    %v1362 = vunpack.c.l.b16 %v587
    %v1363 = vunpack.c.l.b16 %v588
    %v1364 = vunpack.c.l.b16 %v589
    %v1365 = vunpack.c.l.b16 %v590
    %v1366 = vunpack.c.l.b16 %v591
    %v1367 = vunpack.c.l.b16 %v592
    %v1368 = vunpack.c.l.b16 %v593
    %v1369 = vunpack.c.l.b16 %v594
    %v1370 = vunpack.c.l.b16 %v595
    %v1371 = vunpack.c.l.b16 %v596
    %v1372 = vunpack.c.l.b16 %v597
    %v1373 = vunpack.c.l.b16 %v598
    %v1374 = vunpack.c.l.b16 %v599
    %v1375 = vunpack.c.l.b16 %v600
    %v1376 = vunpack.c.l.b16 %v601
    %v1377 = vunpack.c.l.b16 %v602
    %v1378 = vunpack.c.l.b16 %v603
    %v1379 = vunpack.c.l.b16 %v604
    %v1380 = vunpack.c.l.b16 %v605
    %v1381 = vunpack.c.l.b16 %v606
    %v1382 = vunpack.c.l.b16 %v607
    %v1383 = vunpack.c.l.b16 %v608
    %v1384 = vunpack.c.l.b16 %v609
    %v1385 = vunpack.c.l.b16 %v610
    %v1386 = vunpack.c.l.b16 %v611
    %v1387 = vunpack.c.l.b16 %v612
    %v1388 = vunpack.c.l.b16 %v613
    %v1389 = vunpack.c.l.b16 %v614
    %v1390 = vunpack.c.l.b16 %v615
    %v1391 = vunpack.c.l.b16 %v616
    %v1392 = vunpack.c.l.b16 %v617
    %v1393 = vunpack.c.l.b16 %v618
    %v1394 = vunpack.c.l.b16 %v619
    %v1395 = vunpack.c.l.b16 %v620
    %v1396 = vunpack.c.l.b16 %v621
    %v1397 = vunpack.c.l.b16 %v622
    %v1398 = vunpack.c.l.b16 %v623
    %v1399 = vunpack.c.l.b16 %v624
    %v1400 = vunpack.c.l.b16 %v625
    %v1401 = vunpack.c.l.b16 %v626
    %v1402 = vunpack.c.l.b16 %v627
    %v1403 = vunpack.c.l.b16 %v628
    %v1404 = vunpack.c.l.b16 %v629
    %v1405 = vunpack.c.l.b16 %v630
    %v1406 = vunpack.c.l.b16 %v631
    %v1407 = vunpack.c.l.b16 %v632
    %v1408 = vunpack.c.l.b16 %v633
    %v1409 = vunpack.c.l.b16 %v634
    %v1410 = vunpack.c.l.b16 %v635
    %v1411 = vunpack.c.l.b16 %v636
    %v1412 = vunpack.c.l.b16 %v637
    %v1413 = vunpack.c.l.b16 %v638
    %v1414 = vunpack.c.l.b16 %v639
    %v1415 = vunpack.c.l.b16 %v640
    %v1416 = vunpack.c.l.b16 %v641
    %v1417 = vunpack.c.l.b16 %v642
    %v1418 = vunpack.c.l.b16 %v643
    %v1419 = vunpack.c.l.b16 %v644
    %v1420 = vunpack.c.l.b16 %v645
    %v1421 = vunpack.c.l.b16 %v646
    %v1422 = vunpack.c.l.b16 %v647
    %v1423 = vunpack.c.l.b16 %v648
    %v1424 = vunpack.c.l.b16 %v649
    %v1425 = vunpack.c.l.b16 %v650
    %v1426 = vunpack.c.l.b16 %v651
    %v1427 = vunpack.c.l.b16 %v652
    %v1428 = vunpack.c.l.b16 %v653
    %v1429 = vunpack.c.l.b16 %v654
    %v1430 = vunpack.c.l.b16 %v655
    %v1431 = vunpack.c.l.b16 %v656
    %v1432 = vunpack.c.l.b16 %v657
    %v1433 = vunpack.c.l.b16 %v658
    %v1434 = vunpack.c.l.b16 %v659
    %v1435 = vunpack.c.l.b16 %v660
    %v1436 = vunpack.c.l.b16 %v661
    %v1437 = vunpack.c.l.b16 %v662
    %v1438 = vunpack.c.l.b16 %v663
    %v1439 = vunpack.c.l.b16 %v664
    %v1440 = vunpack.c.l.b16 %v665
    %v1441 = vunpack.c.l.b16 %v666
    %v1442 = vunpack.c.l.b16 %v667
    %v1443 = vunpack.c.l.b16 %v668
    %v1444 = vunpack.c.l.b16 %v669
    %v1445 = vunpack.c.l.b16 %v670
    %v1446 = vunpack.c.l.b16 %v671
    %v1447 = vunpack.c.l.b16 %v672
    %v1448 = vunpack.c.l.b16 %v673
    %v1449 = vunpack.c.l.b16 %v674
    %v1450 = vunpack.c.l.b16 %v675
    %v1451 = vunpack.c.l.b16 %v676
    %v1452 = vunpack.c.l.b16 %v677
    %v1453 = vunpack.c.l.b16 %v678
    %v1454 = vunpack.c.l.b16 %v679
    %v1455 = vunpack.c.l.b16 %v680
    %v1456 = vunpack.c.l.b16 %v681
    %v1457 = vunpack.c.l.b16 %v682
    %v1458 = vunpack.c.l.b16 %v683
    %v1459 = vunpack.c.l.b16 %v684
    %v1460 = vunpack.c.l.b16 %v685
    %v1461 = vunpack.c.l.b16 %v686
    %v1462 = vunpack.c.l.b16 %v687
    %v1463 = vunpack.c.l.b16 %v688
    %v1464 = vunpack.c.l.b16 %v689
    %v1465 = vunpack.c.l.b16 %v690
    %v1466 = vunpack.c.l.b16 %v691
    %v1467 = vunpack.c.l.b16 %v692
    %v1468 = vunpack.c.l.b16 %v693
    %v1469 = vunpack.c.l.b16 %v694
    %v1470 = vunpack.c.l.b16 %v695
    %v1471 = vunpack.c.l.b16 %v696
    %v1472 = vunpack.c.l.b16 %v697
    %v1473 = vunpack.c.l.b16 %v698
    %v1474 = vunpack.c.l.b16 %v699
    %v1475 = vunpack.c.l.b16 %v700
    %v1476 = vunpack.c.l.b16 %v701
    %v1477 = vunpack.c.l.b16 %v702
    %v1478 = vunpack.c.l.b16 %v703
    %v1479 = vunpack.c.l.b16 %v704
    %v1480 = vunpack.c.l.b16 %v705
    %v1481 = vunpack.c.l.b16 %v706
    %v1482 = vunpack.c.l.b16 %v707
    %v1483 = vunpack.c.l.b16 %v708
    %v1484 = vunpack.c.l.b16 %v709
    %v1485 = vunpack.c.l.b16 %v710
    %v1486 = vunpack.c.l.b16 %v711
    %v1487 = vunpack.c.l.b16 %v712
    %v1488 = vunpack.c.l.b16 %v713
    %v1489 = vunpack.c.l.b16 %v714
    %v1490 = vunpack.c.l.b16 %v715
    %v1491 = vunpack.c.l.b16 %v716
    %v1492 = vunpack.c.l.b16 %v717
    %v1493 = vunpack.c.l.b16 %v718
    %v1494 = vunpack.c.l.b16 %v719
    %v1495 = vunpack.c.l.b16 %v720
    %v1496 = vunpack.c.l.b16 %v721
    %v1497 = vunpack.c.l.b16 %v722
    %v1498 = vunpack.c.l.b16 %v723
    %v1499 = vunpack.c.l.b16 %v724
    %v1500 = vunpack.c.l.b16 %v725
    %v1501 = vunpack.c.l.b16 %v726
    %v1502 = vunpack.c.l.b16 %v727
    %v1503 = vunpack.c.l.b16 %v728
    %v1504 = vunpack.c.l.b16 %v729
    %v1505 = vunpack.c.l.b16 %v730
    %v1506 = vunpack.c.l.b16 %v731
    %v1507 = vunpack.c.l.b16 %v732
    %v1508 = vunpack.c.l.b16 %v733
    %v1509 = vunpack.c.l.b16 %v734
    %v1510 = vunpack.c.l.b16 %v735
    %v1511 = vunpack.c.l.b16 %v736
    %v1512 = vunpack.c.l.b16 %v737
    %v1513 = vunpack.c.l.b16 %v738
    %v1514 = vunpack.c.l.b16 %v739
    %v1515 = vunpack.c.l.b16 %v740
    %v1516 = vunpack.c.l.b16 %v741
    %v1517 = vunpack.c.l.b16 %v742
    %v1518 = vunpack.c.l.b16 %v743
    %v1519 = vunpack.c.l.b16 %v744
    %v1520 = vunpack.c.l.b16 %v745
    %v1521 = vunpack.c.l.b16 %v746
    %v1522 = vunpack.c.l.b16 %v747
    %v1523 = vunpack.c.l.b16 %v748
    %v1524 = vunpack.c.l.b16 %v749
    %v1525 = vunpack.c.l.b16 %v750
    %v1526 = vunpack.c.l.b16 %v751
    %v1527 = vunpack.c.l.b16 %v752
    %v1528 = vunpack.c.l.b16 %v753
    %v1529 = vunpack.c.l.b16 %v754
    %v1530 = vunpack.c.l.b16 %v755
    %v1531 = vunpack.c.l.b16 %v756
    %v1532 = vunpack.c.l.b16 %v757
    %v1533 = vunpack.c.l.b16 %v758
    %v1534 = vunpack.c.l.b16 %v759
    %v1535 = vunpack.c.l.b16 %v760
    %v1536 = vunpack.c.l.b16 %v761
    %v1537 = vunpack.c.l.b16 %v762
    %v1538 = vunpack.c.l.b16 %v763
    %v1539 = vunpack.c.l.b16 %v764
    %v1540 = vunpack.c.l.b16 %v765
    %v1541 = vunpack.c.l.b16 %v766
    %v1542 = vunpack.c.l.b16 %v767
    %v1543 = vunpack.c.l.b16 %v768
    %v1544 = vunpack.c.l.b16 %v769
    %v1545 = vunpack.c.l.b16 %v770
    %v1546 = vunpack.c.l.b16 %v771
    %v1547 = vunpack.c.l.b16 %v772
    %v1548 = vunpack.c.l.b16 %v773
    %v1549 = vunpack.c.l.b16 %v774
    %v1550 = vunpack.c.l.b16 %v775
    %v1551 = vunpack.c.l.b16 %v776
    %v1552 = vunpack.c.l.b16 %v777
    %v1553 = vunpack.c.l.b16 %v778
    %v1554 = vpack.c.b16 %v1171, %v1170
    %v1555 = vpack.c.b16 %v1173, %v1172
    %v1556 = vpack.c.b16 %v1175, %v1174
    %v1557 = vpack.c.b16 %v1177, %v1176
    %v1558 = vpack.c.b16 %v1179, %v1178
    %v1559 = vpack.c.b16 %v1181, %v1180
    %v1560 = vpack.c.b16 %v1183, %v1182
    %v1561 = vpack.c.b16 %v1185, %v1184
    %v1562 = vpack.c.b16 %v1187, %v1186
    %v1563 = vpack.c.b16 %v1189, %v1188
    %v1564 = vpack.c.b16 %v1191, %v1190
    %v1565 = vpack.c.b16 %v1193, %v1192
    %v1566 = vpack.c.b16 %v1195, %v1194
    %v1567 = vpack.c.b16 %v1197, %v1196
    %v1568 = vpack.c.b16 %v1199, %v1198
    %v1569 = vpack.c.b16 %v1201, %v1200
    %v1570 = vpack.c.b16 %v1203, %v1202
    %v1571 = vpack.c.b16 %v1205, %v1204
    %v1572 = vpack.c.b16 %v1207, %v1206
    %v1573 = vpack.c.b16 %v1209, %v1208
    %v1574 = vpack.c.b16 %v1211, %v1210
    %v1575 = vpack.c.b16 %v1213, %v1212
    %v1576 = vpack.c.b16 %v1215, %v1214
    %v1577 = vpack.c.b16 %v1217, %v1216
    %v1578 = vpack.c.b16 %v1219, %v1218
    %v1579 = vpack.c.b16 %v1221, %v1220
    %v1580 = vpack.c.b16 %v1223, %v1222
    %v1581 = vpack.c.b16 %v1225, %v1224
    %v1582 = vpack.c.b16 %v1227, %v1226
    %v1583 = vpack.c.b16 %v1229, %v1228
    %v1584 = vpack.c.b16 %v1231, %v1230
    %v1585 = vpack.c.b16 %v1233, %v1232
    %v1586 = vpack.c.b16 %v1235, %v1234
    %v1587 = vpack.c.b16 %v1237, %v1236
    %v1588 = vpack.c.b16 %v1239, %v1238
    %v1589 = vpack.c.b16 %v1241, %v1240
    %v1590 = vpack.c.b16 %v1243, %v1242
    %v1591 = vpack.c.b16 %v1245, %v1244
    %v1592 = vpack.c.b16 %v1247, %v1246
    %v1593 = vpack.c.b16 %v1249, %v1248
    %v1594 = vpack.c.b16 %v1251, %v1250
    %v1595 = vpack.c.b16 %v1253, %v1252
    %v1596 = vpack.c.b16 %v1255, %v1254
    %v1597 = vpack.c.b16 %v1257, %v1256
    %v1598 = vpack.c.b16 %v1259, %v1258
    %v1599 = vpack.c.b16 %v1261, %v1260
    %v1600 = vpack.c.b16 %v1263, %v1262
    %v1601 = vpack.c.b16 %v1265, %v1264
    %v1602 = vpack.c.b16 %v1267, %v1266
    %v1603 = vpack.c.b16 %v1269, %v1268
    %v1604 = vpack.c.b16 %v1271, %v1270
    %v1605 = vpack.c.b16 %v1273, %v1272
    %v1606 = vpack.c.b16 %v1275, %v1274
    %v1607 = vpack.c.b16 %v1277, %v1276
    %v1608 = vpack.c.b16 %v1279, %v1278
    %v1609 = vpack.c.b16 %v1281, %v1280
    %v1610 = vpack.c.b16 %v1283, %v1282
    %v1611 = vpack.c.b16 %v1285, %v1284
    %v1612 = vpack.c.b16 %v1287, %v1286
    %v1613 = vpack.c.b16 %v1289, %v1288
    %v1614 = vpack.c.b16 %v1291, %v1290
    %v1615 = vpack.c.b16 %v1293, %v1292
    %v1616 = vpack.c.b16 %v1295, %v1294
    %v1617 = vpack.c.b16 %v1297, %v1296
    %v1618 = vpack.c.b16 %v1299, %v1298
    %v1619 = vpack.c.b16 %v1301, %v1300
    %v1620 = vpack.c.b16 %v1303, %v1302
    %v1621 = vpack.c.b16 %v1305, %v1304
    %v1622 = vpack.c.b16 %v1307, %v1306
    %v1623 = vpack.c.b16 %v1309, %v1308
    %v1624 = vpack.c.b16 %v1311, %v1310
    %v1625 = vpack.c.b16 %v1313, %v1312
    %v1626 = vpack.c.b16 %v1315, %v1314
    %v1627 = vpack.c.b16 %v1317, %v1316
    %v1628 = vpack.c.b16 %v1319, %v1318
    %v1629 = vpack.c.b16 %v1321, %v1320
    %v1630 = vpack.c.b16 %v1323, %v1322
    %v1631 = vpack.c.b16 %v1325, %v1324
    %v1632 = vpack.c.b16 %v1327, %v1326
    %v1633 = vpack.c.b16 %v1329, %v1328
    %v1634 = vpack.c.b16 %v1331, %v1330
    %v1635 = vpack.c.b16 %v1333, %v1332
    %v1636 = vpack.c.b16 %v1335, %v1334
    %v1637 = vpack.c.b16 %v1337, %v1336
    %v1638 = vpack.c.b16 %v1339, %v1338
    %v1639 = vpack.c.b16 %v1341, %v1340
    %v1640 = vpack.c.b16 %v1343, %v1342
    %v1641 = vpack.c.b16 %v1345, %v1344
    %v1642 = vpack.c.b16 %v1347, %v1346
    %v1643 = vpack.c.b16 %v1349, %v1348
    %v1644 = vpack.c.b16 %v1351, %v1350
    %v1645 = vpack.c.b16 %v1353, %v1352
    %v1646 = vpack.c.b16 %v1355, %v1354
    %v1647 = vpack.c.b16 %v1357, %v1356
    %v1648 = vpack.c.b16 %v1359, %v1358
    %v1649 = vpack.c.b16 %v1361, %v1360
    %v1650 = vpack.c.b16 %v1363, %v1362
    %v1651 = vpack.c.b16 %v1365, %v1364
    %v1652 = vpack.c.b16 %v1367, %v1366
    %v1653 = vpack.c.b16 %v1369, %v1368
    %v1654 = vpack.c.b16 %v1371, %v1370
    %v1655 = vpack.c.b16 %v1373, %v1372
    %v1656 = vpack.c.b16 %v1375, %v1374
    %v1657 = vpack.c.b16 %v1377, %v1376
    %v1658 = vpack.c.b16 %v1379, %v1378
    %v1659 = vpack.c.b16 %v1381, %v1380
    %v1660 = vpack.c.b16 %v1383, %v1382
    %v1661 = vpack.c.b16 %v1385, %v1384
    %v1662 = vpack.c.b16 %v1387, %v1386
    %v1663 = vpack.c.b16 %v1389, %v1388
    %v1664 = vpack.c.b16 %v1391, %v1390
    %v1665 = vpack.c.b16 %v1393, %v1392
    %v1666 = vpack.c.b16 %v1395, %v1394
    %v1667 = vpack.c.b16 %v1397, %v1396
    %v1668 = vpack.c.b16 %v1399, %v1398
    %v1669 = vpack.c.b16 %v1401, %v1400
    %v1670 = vpack.c.b16 %v1403, %v1402
    %v1671 = vpack.c.b16 %v1405, %v1404
    %v1672 = vpack.c.b16 %v1407, %v1406
    %v1673 = vpack.c.b16 %v1409, %v1408
    %v1674 = vpack.c.b16 %v1411, %v1410
    %v1675 = vpack.c.b16 %v1413, %v1412
    %v1676 = vpack.c.b16 %v1415, %v1414
    %v1677 = vpack.c.b16 %v1417, %v1416
    %v1678 = vpack.c.b16 %v1419, %v1418
    %v1679 = vpack.c.b16 %v1421, %v1420
    %v1680 = vpack.c.b16 %v1423, %v1422
    %v1681 = vpack.c.b16 %v1425, %v1424
    %v1682 = vpack.c.b16 %v1427, %v1426
    %v1683 = vpack.c.b16 %v1429, %v1428
    %v1684 = vpack.c.b16 %v1431, %v1430
    %v1685 = vpack.c.b16 %v1433, %v1432
    %v1686 = vpack.c.b16 %v1435, %v1434
    %v1687 = vpack.c.b16 %v1437, %v1436
    %v1688 = vpack.c.b16 %v1439, %v1438
    %v1689 = vpack.c.b16 %v1441, %v1440
    %v1690 = vpack.c.b16 %v1443, %v1442
    %v1691 = vpack.c.b16 %v1445, %v1444
    %v1692 = vpack.c.b16 %v1447, %v1446
    %v1693 = vpack.c.b16 %v1449, %v1448
    %v1694 = vpack.c.b16 %v1451, %v1450
    %v1695 = vpack.c.b16 %v1453, %v1452
    %v1696 = vpack.c.b16 %v1455, %v1454
    %v1697 = vpack.c.b16 %v1457, %v1456
    %v1698 = vpack.c.b16 %v1459, %v1458
    %v1699 = vpack.c.b16 %v1461, %v1460
    %v1700 = vpack.c.b16 %v1463, %v1462
    %v1701 = vpack.c.b16 %v1465, %v1464
    %v1702 = vpack.c.b16 %v1467, %v1466
    %v1703 = vpack.c.b16 %v1469, %v1468
    %v1704 = vpack.c.b16 %v1471, %v1470
    %v1705 = vpack.c.b16 %v1473, %v1472
    %v1706 = vpack.c.b16 %v1475, %v1474
    %v1707 = vpack.c.b16 %v1477, %v1476
    %v1708 = vpack.c.b16 %v1479, %v1478
    %v1709 = vpack.c.b16 %v1481, %v1480
    %v1710 = vpack.c.b16 %v1483, %v1482
    %v1711 = vpack.c.b16 %v1485, %v1484
    %v1712 = vpack.c.b16 %v1487, %v1486
    %v1713 = vpack.c.b16 %v1489, %v1488
    %v1714 = vpack.c.b16 %v1491, %v1490
    %v1715 = vpack.c.b16 %v1493, %v1492
    %v1716 = vpack.c.b16 %v1495, %v1494
    %v1717 = vpack.c.b16 %v1497, %v1496
    %v1718 = vpack.c.b16 %v1499, %v1498
    %v1719 = vpack.c.b16 %v1501, %v1500
    %v1720 = vpack.c.b16 %v1503, %v1502
    %v1721 = vpack.c.b16 %v1505, %v1504
    %v1722 = vpack.c.b16 %v1507, %v1506
    %v1723 = vpack.c.b16 %v1509, %v1508
    %v1724 = vpack.c.b16 %v1511, %v1510
    %v1725 = vpack.c.b16 %v1513, %v1512
    %v1726 = vpack.c.b16 %v1515, %v1514
    %v1727 = vpack.c.b16 %v1517, %v1516
    %v1728 = vpack.c.b16 %v1519, %v1518
    %v1729 = vpack.c.b16 %v1521, %v1520
    %v1730 = vpack.c.b16 %v1523, %v1522
    %v1731 = vpack.c.b16 %v1525, %v1524
    %v1732 = vpack.c.b16 %v1527, %v1526
    %v1733 = vpack.c.b16 %v1529, %v1528
    %v1734 = vpack.c.b16 %v1531, %v1530
    %v1735 = vpack.c.b16 %v1533, %v1532
    %v1736 = vpack.c.b16 %v1535, %v1534
    %v1737 = vpack.c.b16 %v1537, %v1536
    %v1738 = vpack.c.b16 %v1539, %v1538
    %v1739 = vpack.c.b16 %v1541, %v1540
    %v1740 = vpack.c.b16 %v1543, %v1542
    %v1741 = vpack.c.b16 %v1545, %v1544
    %v1742 = vpack.c.b16 %v1547, %v1546
    %v1743 = vpack.c.b16 %v1549, %v1548
    %v1744 = vpack.c.b16 %v1551, %v1550
    %v1745 = vpack.c.b16 %v1553, %v1552
    %1938 = vmatprep.subr.bf16.mxu0 0
    %1939 = vmatpush1.bf16.msra.mxu0 %v1554
    %1940 = vmatprep.subr.bf16.mxu0 0
    %1941 = vmatpush1.bf16.msra.mxu0 %v1555
    %1942 = vmatprep.subr.bf16.mxu0 0
    %1943 = vmatpush1.bf16.msra.mxu0 %v1556
    %1944 = vmatprep.subr.bf16.mxu0 0
    %1945 = vmatpush1.bf16.msra.mxu0 %v1557
    %1946 = vmatprep.subr.bf16.mxu0 0
    %1947 = vmatpush1.bf16.msra.mxu0 %v1558
    %1948 = vmatprep.subr.bf16.mxu0 0
    %1949 = vmatpush1.bf16.msra.mxu0 %v1559
    %1950 = vmatprep.subr.bf16.mxu0 0
    %1951 = vmatpush1.bf16.msra.mxu0 %v1560
    %1952 = vmatprep.subr.bf16.mxu0 0
    %1953 = vmatpush1.bf16.msra.mxu0 %v1561
    %1954 = vmatprep.subr.bf16.mxu0 0
    %1955 = vmatpush1.bf16.msra.mxu0 %v1562
    %1956 = vmatprep.subr.bf16.mxu0 0
    %1957 = vmatpush1.bf16.msra.mxu0 %v1563
    %1958 = vmatprep.subr.bf16.mxu0 0
    %1959 = vmatpush1.bf16.msra.mxu0 %v1564
    %1960 = vmatprep.subr.bf16.mxu0 0
    %1961 = vmatpush1.bf16.msra.mxu0 %v1565
    %1962 = vmatprep.subr.bf16.mxu0 0
    %1963 = vmatpush1.bf16.msra.mxu0 %v1566
    %1964 = vmatprep.subr.bf16.mxu0 0
    %1965 = vmatpush1.bf16.msra.mxu0 %v1567
    %1966 = vmatprep.subr.bf16.mxu0 0
    %1967 = vmatpush1.bf16.msra.mxu0 %v1568
    %1968 = vmatprep.subr.bf16.mxu0 0
    %1969 = vmatpush1.bf16.msra.mxu0 %v1569
    %1970 = vmatprep.mubr.bf16.mxu0 %v372
    %1971 = vmatmul.mubr.bf16.gmra.mrb[0].mxu0 %v371
    %v1972 = vpop.f32.mrb[0].mxu0
    %v1973 = vadd.f32 %v784, %v1972
    %v1974 = vpop.f32.mrb[0].mxu0
    %v1975 = vpop.f32.mrb[0].mxu0
    %v1976 = vpop.f32.mrb[0].mxu0
    %1977 = vdwg.mxu0
    %1978 = vmatprep.subr.bf16.mxu0 0
    %1979 = vmatpush1.bf16.msra.mxu0 %v1570
    %1980 = vmatprep.subr.bf16.mxu0 0
    %1981 = vmatpush1.bf16.msra.mxu0 %v1571
    %1982 = vmatprep.subr.bf16.mxu0 0
    %1983 = vmatpush1.bf16.msra.mxu0 %v1572
    %1984 = vmatprep.subr.bf16.mxu0 0
    %1985 = vmatpush1.bf16.msra.mxu0 %v1573
    %1986 = vmatprep.subr.bf16.mxu0 0
    %1987 = vmatpush1.bf16.msra.mxu0 %v1574
    %1988 = vmatprep.subr.bf16.mxu0 0
    %1989 = vmatpush1.bf16.msra.mxu0 %v1575
    %1990 = vmatprep.subr.bf16.mxu0 0
    %1991 = vmatpush1.bf16.msra.mxu0 %v1576
    %1992 = vmatprep.subr.bf16.mxu0 0
    %1993 = vmatpush1.bf16.msra.mxu0 %v1577
    %1994 = vmatprep.subr.bf16.mxu0 0
    %1995 = vmatpush1.bf16.msra.mxu0 %v1578
    %1996 = vmatprep.subr.bf16.mxu0 0
    %1997 = vmatpush1.bf16.msra.mxu0 %v1579
    %1998 = vmatprep.subr.bf16.mxu0 0
    %1999 = vmatpush1.bf16.msra.mxu0 %v1580
    %2000 = vmatprep.subr.bf16.mxu0 0
    %2001 = vmatpush1.bf16.msra.mxu0 %v1581
    %2002 = vmatprep.subr.bf16.mxu0 0
    %2003 = vmatpush1.bf16.msra.mxu0 %v1582
    %2004 = vmatprep.subr.bf16.mxu0 0
    %2005 = vmatpush1.bf16.msra.mxu0 %v1583
    %2006 = vmatprep.subr.bf16.mxu0 0
    %2007 = vmatpush1.bf16.msra.mxu0 %v1584
    %2008 = vmatprep.subr.bf16.mxu0 0
    %2009 = vmatpush1.bf16.msra.mxu0 %v1585
    %2010 = vmatprep.mubr.bf16.mxu0 %v374
    %2011 = vmatmul.mubr.bf16.gmra.mrb[0].mxu0 %v373
    %v2012 = vpop.f32.mrb[0].mxu0
    %v2013 = vadd.f32 %v1973, %v2012
    %v2014 = vpop.f32.mrb[0].mxu0
    %v2015 = vpop.f32.mrb[0].mxu0
    %v2016 = vpop.f32.mrb[0].mxu0
    %2017 = vdwg.mxu0
    %2018 = vmatprep.subr.bf16.mxu0 0
    %2019 = vmatpush1.bf16.msra.mxu0 %v1586
    %2020 = vmatprep.subr.bf16.mxu0 0
    %2021 = vmatpush1.bf16.msra.mxu0 %v1587
    %2022 = vmatprep.subr.bf16.mxu0 0
    %2023 = vmatpush1.bf16.msra.mxu0 %v1588
    %2024 = vmatprep.subr.bf16.mxu0 0
    %2025 = vmatpush1.bf16.msra.mxu0 %v1589
    %2026 = vmatprep.subr.bf16.mxu0 0
    %2027 = vmatpush1.bf16.msra.mxu0 %v1590
    %2028 = vmatprep.subr.bf16.mxu0 0
    %2029 = vmatpush1.bf16.msra.mxu0 %v1591
    %2030 = vmatprep.subr.bf16.mxu0 0
    %2031 = vmatpush1.bf16.msra.mxu0 %v1592
    %2032 = vmatprep.subr.bf16.mxu0 0
    %2033 = vmatpush1.bf16.msra.mxu0 %v1593
    %2034 = vmatprep.subr.bf16.mxu0 0
    %2035 = vmatpush1.bf16.msra.mxu0 %v1594
    %2036 = vmatprep.subr.bf16.mxu0 0
    %2037 = vmatpush1.bf16.msra.mxu0 %v1595
    %2038 = vmatprep.subr.bf16.mxu0 0
    %2039 = vmatpush1.bf16.msra.mxu0 %v1596
    %2040 = vmatprep.subr.bf16.mxu0 0
    %2041 = vmatpush1.bf16.msra.mxu0 %v1597
    %2042 = vmatprep.subr.bf16.mxu0 0
    %2043 = vmatpush1.bf16.msra.mxu0 %v1598
    %2044 = vmatprep.subr.bf16.mxu0 0
    %2045 = vmatpush1.bf16.msra.mxu0 %v1599
    %2046 = vmatprep.subr.bf16.mxu0 0
    %2047 = vmatpush1.bf16.msra.mxu0 %v1600
    %2048 = vmatprep.subr.bf16.mxu0 0
    %2049 = vmatpush1.bf16.msra.mxu0 %v1601
    %2050 = vmatprep.mubr.bf16.mxu0 %v376
    %2051 = vmatmul.mubr.bf16.gmra.mrb[0].mxu0 %v375
    %v2052 = vpop.f32.mrb[0].mxu0
    %v2053 = vadd.f32 %v2013, %v2052
    %v2054 = vpop.f32.mrb[0].mxu0
    %v2055 = vpop.f32.mrb[0].mxu0
    %v2056 = vpop.f32.mrb[0].mxu0
    %2057 = vdwg.mxu0
    %2058 = vmatprep.subr.bf16.mxu0 0
    %2059 = vmatpush1.bf16.msra.mxu0 %v1602
    %2060 = vmatprep.subr.bf16.mxu0 0
    %2061 = vmatpush1.bf16.msra.mxu0 %v1603
    %2062 = vmatprep.subr.bf16.mxu0 0
    %2063 = vmatpush1.bf16.msra.mxu0 %v1604
    %2064 = vmatprep.subr.bf16.mxu0 0
    %2065 = vmatpush1.bf16.msra.mxu0 %v1605
    %2066 = vmatprep.subr.bf16.mxu0 0
    %2067 = vmatpush1.bf16.msra.mxu0 %v1606
    %2068 = vmatprep.subr.bf16.mxu0 0
    %2069 = vmatpush1.bf16.msra.mxu0 %v1607
    %2070 = vmatprep.subr.bf16.mxu0 0
    %2071 = vmatpush1.bf16.msra.mxu0 %v1608
    %2072 = vmatprep.subr.bf16.mxu0 0
    %2073 = vmatpush1.bf16.msra.mxu0 %v1609
    %2074 = vmatprep.subr.bf16.mxu0 0
    %2075 = vmatpush1.bf16.msra.mxu0 %v1610
    %2076 = vmatprep.subr.bf16.mxu0 0
    %2077 = vmatpush1.bf16.msra.mxu0 %v1611
    %2078 = vmatprep.subr.bf16.mxu0 0
    %2079 = vmatpush1.bf16.msra.mxu0 %v1612
    %2080 = vmatprep.subr.bf16.mxu0 0
    %2081 = vmatpush1.bf16.msra.mxu0 %v1613
    %2082 = vmatprep.subr.bf16.mxu0 0
    %2083 = vmatpush1.bf16.msra.mxu0 %v1614
    %2084 = vmatprep.subr.bf16.mxu0 0
    %2085 = vmatpush1.bf16.msra.mxu0 %v1615
    %2086 = vmatprep.subr.bf16.mxu0 0
    %2087 = vmatpush1.bf16.msra.mxu0 %v1616
    %2088 = vmatprep.subr.bf16.mxu0 0
    %2089 = vmatpush1.bf16.msra.mxu0 %v1617
    %2090 = vmatprep.mubr.bf16.mxu0 %v378
    %2091 = vmatmul.mubr.bf16.gmra.mrb[0].mxu0 %v377
    %v2092 = vpop.f32.mrb[0].mxu0
    %v2093 = vadd.f32 %v2053, %v2092
    %v2094 = vpop.f32.mrb[0].mxu0
    %v2095 = vpop.f32.mrb[0].mxu0
    %v2096 = vpop.f32.mrb[0].mxu0
    %2097 = vdwg.mxu0
    %2098 = vmatprep.subr.bf16.mxu0 0
    %2099 = vmatpush1.bf16.msra.mxu0 %v1618
    %2100 = vmatprep.subr.bf16.mxu0 0
    %2101 = vmatpush1.bf16.msra.mxu0 %v1619
    %2102 = vmatprep.subr.bf16.mxu0 0
    %2103 = vmatpush1.bf16.msra.mxu0 %v1620
    %2104 = vmatprep.subr.bf16.mxu0 0
    %2105 = vmatpush1.bf16.msra.mxu0 %v1621
    %2106 = vmatprep.subr.bf16.mxu0 0
    %2107 = vmatpush1.bf16.msra.mxu0 %v1622
    %2108 = vmatprep.subr.bf16.mxu0 0
    %2109 = vmatpush1.bf16.msra.mxu0 %v1623
    %2110 = vmatprep.subr.bf16.mxu0 0
    %2111 = vmatpush1.bf16.msra.mxu0 %v1624
    %2112 = vmatprep.subr.bf16.mxu0 0
    %2113 = vmatpush1.bf16.msra.mxu0 %v1625
    %2114 = vmatprep.subr.bf16.mxu0 0
    %2115 = vmatpush1.bf16.msra.mxu0 %v1626
    %2116 = vmatprep.subr.bf16.mxu0 0
    %2117 = vmatpush1.bf16.msra.mxu0 %v1627
    %2118 = vmatprep.subr.bf16.mxu0 0
    %2119 = vmatpush1.bf16.msra.mxu0 %v1628
    %2120 = vmatprep.subr.bf16.mxu0 0
    %2121 = vmatpush1.bf16.msra.mxu0 %v1629
    %2122 = vmatprep.subr.bf16.mxu0 0
    %2123 = vmatpush1.bf16.msra.mxu0 %v1630
    %2124 = vmatprep.subr.bf16.mxu0 0
    %2125 = vmatpush1.bf16.msra.mxu0 %v1631
    %2126 = vmatprep.subr.bf16.mxu0 0
    %2127 = vmatpush1.bf16.msra.mxu0 %v1632
    %2128 = vmatprep.subr.bf16.mxu0 0
    %2129 = vmatpush1.bf16.msra.mxu0 %v1633
    %2130 = vmatprep.mubr.bf16.mxu0 %v380
    %2131 = vmatmul.mubr.bf16.gmra.mrb[0].mxu0 %v379
    %v2132 = vpop.f32.mrb[0].mxu0
    %v2133 = vadd.f32 %v2093, %v2132
    %v2134 = vpop.f32.mrb[0].mxu0
    %v2135 = vpop.f32.mrb[0].mxu0
    %v2136 = vpop.f32.mrb[0].mxu0
    %2137 = vdwg.mxu0
    %2138 = vmatprep.subr.bf16.mxu0 0
    %2139 = vmatpush1.bf16.msra.mxu0 %v1634
    %2140 = vmatprep.subr.bf16.mxu0 0
    %2141 = vmatpush1.bf16.msra.mxu0 %v1635
    %2142 = vmatprep.subr.bf16.mxu0 0
    %2143 = vmatpush1.bf16.msra.mxu0 %v1636
    %2144 = vmatprep.subr.bf16.mxu0 0
    %2145 = vmatpush1.bf16.msra.mxu0 %v1637
    %2146 = vmatprep.subr.bf16.mxu0 0
    %2147 = vmatpush1.bf16.msra.mxu0 %v1638
    %2148 = vmatprep.subr.bf16.mxu0 0
    %2149 = vmatpush1.bf16.msra.mxu0 %v1639
    %2150 = vmatprep.subr.bf16.mxu0 0
    %2151 = vmatpush1.bf16.msra.mxu0 %v1640
    %2152 = vmatprep.subr.bf16.mxu0 0
    %2153 = vmatpush1.bf16.msra.mxu0 %v1641
    %2154 = vmatprep.subr.bf16.mxu0 0
    %2155 = vmatpush1.bf16.msra.mxu0 %v1642
    %2156 = vmatprep.subr.bf16.mxu0 0
    %2157 = vmatpush1.bf16.msra.mxu0 %v1643
    %2158 = vmatprep.subr.bf16.mxu0 0
    %2159 = vmatpush1.bf16.msra.mxu0 %v1644
    %2160 = vmatprep.subr.bf16.mxu0 0
    %2161 = vmatpush1.bf16.msra.mxu0 %v1645
    %2162 = vmatprep.subr.bf16.mxu0 0
    %2163 = vmatpush1.bf16.msra.mxu0 %v1646
    %2164 = vmatprep.subr.bf16.mxu0 0
    %2165 = vmatpush1.bf16.msra.mxu0 %v1647
    %2166 = vmatprep.subr.bf16.mxu0 0
    %2167 = vmatpush1.bf16.msra.mxu0 %v1648
    %2168 = vmatprep.subr.bf16.mxu0 0
    %2169 = vmatpush1.bf16.msra.mxu0 %v1649
    %2170 = vmatprep.mubr.bf16.mxu0 %v382
    %2171 = vmatmul.mubr.bf16.gmra.mrb[0].mxu0 %v381
    %v2172 = vpop.f32.mrb[0].mxu0
    %v2173 = vadd.f32 %v2133, %v2172
    %v2174 = vpop.f32.mrb[0].mxu0
    %v2175 = vpop.f32.mrb[0].mxu0
    %v2176 = vpop.f32.mrb[0].mxu0
    %2177 = vdwg.mxu0
    %2178 = vmatprep.subr.bf16.mxu0 0
    %2179 = vmatpush1.bf16.msra.mxu0 %v1650
    %2180 = vmatprep.subr.bf16.mxu0 0
    %2181 = vmatpush1.bf16.msra.mxu0 %v1651
    %2182 = vmatprep.subr.bf16.mxu0 0
    %2183 = vmatpush1.bf16.msra.mxu0 %v1652
    %2184 = vmatprep.subr.bf16.mxu0 0
    %2185 = vmatpush1.bf16.msra.mxu0 %v1653
    %2186 = vmatprep.subr.bf16.mxu0 0
    %2187 = vmatpush1.bf16.msra.mxu0 %v1654
    %2188 = vmatprep.subr.bf16.mxu0 0
    %2189 = vmatpush1.bf16.msra.mxu0 %v1655
    %2190 = vmatprep.subr.bf16.mxu0 0
    %2191 = vmatpush1.bf16.msra.mxu0 %v1656
    %2192 = vmatprep.subr.bf16.mxu0 0
    %2193 = vmatpush1.bf16.msra.mxu0 %v1657
    %2194 = vmatprep.subr.bf16.mxu0 0
    %2195 = vmatpush1.bf16.msra.mxu0 %v1658
    %2196 = vmatprep.subr.bf16.mxu0 0
    %2197 = vmatpush1.bf16.msra.mxu0 %v1659
    %2198 = vmatprep.subr.bf16.mxu0 0
    %2199 = vmatpush1.bf16.msra.mxu0 %v1660
    %2200 = vmatprep.subr.bf16.mxu0 0
    %2201 = vmatpush1.bf16.msra.mxu0 %v1661
    %2202 = vmatprep.subr.bf16.mxu0 0
    %2203 = vmatpush1.bf16.msra.mxu0 %v1662
    %2204 = vmatprep.subr.bf16.mxu0 0
    %2205 = vmatpush1.bf16.msra.mxu0 %v1663
    %2206 = vmatprep.subr.bf16.mxu0 0
    %2207 = vmatpush1.bf16.msra.mxu0 %v1664
    %2208 = vmatprep.subr.bf16.mxu0 0
    %2209 = vmatpush1.bf16.msra.mxu0 %v1665
    %2210 = vmatprep.mubr.bf16.mxu0 %v384
    %2211 = vmatmul.mubr.bf16.gmra.mrb[0].mxu0 %v383
    %v2212 = vpop.f32.mrb[0].mxu0
    %v2213 = vadd.f32 %v2173, %v2212
    %v2214 = vpop.f32.mrb[0].mxu0
    %v2215 = vpop.f32.mrb[0].mxu0
    %v2216 = vpop.f32.mrb[0].mxu0
    %2217 = vdwg.mxu0
    %2218 = vmatprep.subr.bf16.mxu0 0
    %2219 = vmatpush1.bf16.msra.mxu0 %v1666
    %2220 = vmatprep.subr.bf16.mxu0 0
    %2221 = vmatpush1.bf16.msra.mxu0 %v1667
    %2222 = vmatprep.subr.bf16.mxu0 0
    %2223 = vmatpush1.bf16.msra.mxu0 %v1668
    %2224 = vmatprep.subr.bf16.mxu0 0
    %2225 = vmatpush1.bf16.msra.mxu0 %v1669
    %2226 = vmatprep.subr.bf16.mxu0 0
    %2227 = vmatpush1.bf16.msra.mxu0 %v1670
    %2228 = vmatprep.subr.bf16.mxu0 0
    %2229 = vmatpush1.bf16.msra.mxu0 %v1671
    %2230 = vmatprep.subr.bf16.mxu0 0
    %2231 = vmatpush1.bf16.msra.mxu0 %v1672
    %2232 = vmatprep.subr.bf16.mxu0 0
    %2233 = vmatpush1.bf16.msra.mxu0 %v1673
    %2234 = vmatprep.subr.bf16.mxu0 0
    %2235 = vmatpush1.bf16.msra.mxu0 %v1674
    %2236 = vmatprep.subr.bf16.mxu0 0
    %2237 = vmatpush1.bf16.msra.mxu0 %v1675
    %2238 = vmatprep.subr.bf16.mxu0 0
    %2239 = vmatpush1.bf16.msra.mxu0 %v1676
    %2240 = vmatprep.subr.bf16.mxu0 0
    %2241 = vmatpush1.bf16.msra.mxu0 %v1677
    %2242 = vmatprep.subr.bf16.mxu0 0
    %2243 = vmatpush1.bf16.msra.mxu0 %v1678
    %2244 = vmatprep.subr.bf16.mxu0 0
    %2245 = vmatpush1.bf16.msra.mxu0 %v1679
    %2246 = vmatprep.subr.bf16.mxu0 0
    %2247 = vmatpush1.bf16.msra.mxu0 %v1680
    %2248 = vmatprep.subr.bf16.mxu0 0
    %2249 = vmatpush1.bf16.msra.mxu0 %v1681
    %2250 = vmatprep.mubr.bf16.mxu0 %v386
    %2251 = vmatmul.mubr.bf16.gmra.mrb[0].mxu0 %v385
    %v2252 = vpop.f32.mrb[0].mxu0
    %v2253 = vadd.f32 %v2213, %v2252
    %v2254 = vpop.f32.mrb[0].mxu0
    %v2255 = vpop.f32.mrb[0].mxu0
    %v2256 = vpop.f32.mrb[0].mxu0
    %2257 = vdwg.mxu0
    %2258 = vmatprep.subr.bf16.mxu0 0
    %2259 = vmatpush1.bf16.msra.mxu0 %v1682
    %2260 = vmatprep.subr.bf16.mxu0 0
    %2261 = vmatpush1.bf16.msra.mxu0 %v1683
    %2262 = vmatprep.subr.bf16.mxu0 0
    %2263 = vmatpush1.bf16.msra.mxu0 %v1684
    %2264 = vmatprep.subr.bf16.mxu0 0
    %2265 = vmatpush1.bf16.msra.mxu0 %v1685
    %2266 = vmatprep.subr.bf16.mxu0 0
    %2267 = vmatpush1.bf16.msra.mxu0 %v1686
    %2268 = vmatprep.subr.bf16.mxu0 0
    %2269 = vmatpush1.bf16.msra.mxu0 %v1687
    %2270 = vmatprep.subr.bf16.mxu0 0
    %2271 = vmatpush1.bf16.msra.mxu0 %v1688
    %2272 = vmatprep.subr.bf16.mxu0 0
    %2273 = vmatpush1.bf16.msra.mxu0 %v1689
    %2274 = vmatprep.subr.bf16.mxu0 0
    %2275 = vmatpush1.bf16.msra.mxu0 %v1690
    %2276 = vmatprep.subr.bf16.mxu0 0
    %2277 = vmatpush1.bf16.msra.mxu0 %v1691
    %2278 = vmatprep.subr.bf16.mxu0 0
    %2279 = vmatpush1.bf16.msra.mxu0 %v1692
    %2280 = vmatprep.subr.bf16.mxu0 0
    %2281 = vmatpush1.bf16.msra.mxu0 %v1693
    %2282 = vmatprep.subr.bf16.mxu0 0
    %2283 = vmatpush1.bf16.msra.mxu0 %v1694
    %2284 = vmatprep.subr.bf16.mxu0 0
    %2285 = vmatpush1.bf16.msra.mxu0 %v1695
    %2286 = vmatprep.subr.bf16.mxu0 0
    %2287 = vmatpush1.bf16.msra.mxu0 %v1696
    %2288 = vmatprep.subr.bf16.mxu0 0
    %2289 = vmatpush1.bf16.msra.mxu0 %v1697
    %2290 = vmatprep.mubr.bf16.mxu0 %v388
    %2291 = vmatmul.mubr.bf16.gmra.mrb[0].mxu0 %v387
    %v2292 = vpop.f32.mrb[0].mxu0
    %v2293 = vadd.f32 %v2253, %v2292
    %v2294 = vpop.f32.mrb[0].mxu0
    %v2295 = vpop.f32.mrb[0].mxu0
    %v2296 = vpop.f32.mrb[0].mxu0
    %2297 = vdwg.mxu0
    %2298 = vmatprep.subr.bf16.mxu0 0
    %2299 = vmatpush1.bf16.msra.mxu0 %v1698
    %2300 = vmatprep.subr.bf16.mxu0 0
    %2301 = vmatpush1.bf16.msra.mxu0 %v1699
    %2302 = vmatprep.subr.bf16.mxu0 0
    %2303 = vmatpush1.bf16.msra.mxu0 %v1700
    %2304 = vmatprep.subr.bf16.mxu0 0
    %2305 = vmatpush1.bf16.msra.mxu0 %v1701
    %2306 = vmatprep.subr.bf16.mxu0 0
    %2307 = vmatpush1.bf16.msra.mxu0 %v1702
    %2308 = vmatprep.subr.bf16.mxu0 0
    %2309 = vmatpush1.bf16.msra.mxu0 %v1703
    %2310 = vmatprep.subr.bf16.mxu0 0
    %2311 = vmatpush1.bf16.msra.mxu0 %v1704
    %2312 = vmatprep.subr.bf16.mxu0 0
    %2313 = vmatpush1.bf16.msra.mxu0 %v1705
    %2314 = vmatprep.subr.bf16.mxu0 0
    %2315 = vmatpush1.bf16.msra.mxu0 %v1706
    %2316 = vmatprep.subr.bf16.mxu0 0
    %2317 = vmatpush1.bf16.msra.mxu0 %v1707
    %2318 = vmatprep.subr.bf16.mxu0 0
    %2319 = vmatpush1.bf16.msra.mxu0 %v1708
    %2320 = vmatprep.subr.bf16.mxu0 0
    %2321 = vmatpush1.bf16.msra.mxu0 %v1709
    %2322 = vmatprep.subr.bf16.mxu0 0
    %2323 = vmatpush1.bf16.msra.mxu0 %v1710
    %2324 = vmatprep.subr.bf16.mxu0 0
    %2325 = vmatpush1.bf16.msra.mxu0 %v1711
    %2326 = vmatprep.subr.bf16.mxu0 0
    %2327 = vmatpush1.bf16.msra.mxu0 %v1712
    %2328 = vmatprep.subr.bf16.mxu0 0
    %2329 = vmatpush1.bf16.msra.mxu0 %v1713
    %2330 = vmatprep.mubr.bf16.mxu0 %v390
    %2331 = vmatmul.mubr.bf16.gmra.mrb[0].mxu0 %v389
    %v2332 = vpop.f32.mrb[0].mxu0
    %v2333 = vadd.f32 %v2293, %v2332
    %v2334 = vpop.f32.mrb[0].mxu0
    %v2335 = vpop.f32.mrb[0].mxu0
    %v2336 = vpop.f32.mrb[0].mxu0
    %2337 = vdwg.mxu0
    %2338 = vmatprep.subr.bf16.mxu0 0
    %2339 = vmatpush1.bf16.msra.mxu0 %v1714
    %2340 = vmatprep.subr.bf16.mxu0 0
    %2341 = vmatpush1.bf16.msra.mxu0 %v1715
    %2342 = vmatprep.subr.bf16.mxu0 0
    %2343 = vmatpush1.bf16.msra.mxu0 %v1716
    %2344 = vmatprep.subr.bf16.mxu0 0
    %2345 = vmatpush1.bf16.msra.mxu0 %v1717
    %2346 = vmatprep.subr.bf16.mxu0 0
    %2347 = vmatpush1.bf16.msra.mxu0 %v1718
    %2348 = vmatprep.subr.bf16.mxu0 0
    %2349 = vmatpush1.bf16.msra.mxu0 %v1719
    %2350 = vmatprep.subr.bf16.mxu0 0
    %2351 = vmatpush1.bf16.msra.mxu0 %v1720
    %2352 = vmatprep.subr.bf16.mxu0 0
    %2353 = vmatpush1.bf16.msra.mxu0 %v1721
    %2354 = vmatprep.subr.bf16.mxu0 0
    %2355 = vmatpush1.bf16.msra.mxu0 %v1722
    %2356 = vmatprep.subr.bf16.mxu0 0
    %2357 = vmatpush1.bf16.msra.mxu0 %v1723
    %2358 = vmatprep.subr.bf16.mxu0 0
    %2359 = vmatpush1.bf16.msra.mxu0 %v1724
    %2360 = vmatprep.subr.bf16.mxu0 0
    %2361 = vmatpush1.bf16.msra.mxu0 %v1725
    %2362 = vmatprep.subr.bf16.mxu0 0
    %2363 = vmatpush1.bf16.msra.mxu0 %v1726
    %2364 = vmatprep.subr.bf16.mxu0 0
    %2365 = vmatpush1.bf16.msra.mxu0 %v1727
    %2366 = vmatprep.subr.bf16.mxu0 0
    %2367 = vmatpush1.bf16.msra.mxu0 %v1728
    %2368 = vmatprep.subr.bf16.mxu0 0
    %2369 = vmatpush1.bf16.msra.mxu0 %v1729
    %2370 = vmatprep.mubr.bf16.mxu0 %v392
    %2371 = vmatmul.mubr.bf16.gmra.mrb[0].mxu0 %v391
    %v2372 = vpop.f32.mrb[0].mxu0
    %v2373 = vadd.f32 %v2333, %v2372
    %v2374 = vpop.f32.mrb[0].mxu0
    %v2375 = vpop.f32.mrb[0].mxu0
    %v2376 = vpop.f32.mrb[0].mxu0
    %2377 = vdwg.mxu0
    %2378 = vmatprep.subr.bf16.mxu0 0
    %2379 = vmatpush1.bf16.msra.mxu0 %v1730
    %2380 = vmatprep.subr.bf16.mxu0 0
    %2381 = vmatpush1.bf16.msra.mxu0 %v1731
    %2382 = vmatprep.subr.bf16.mxu0 0
    %2383 = vmatpush1.bf16.msra.mxu0 %v1732
    %2384 = vmatprep.subr.bf16.mxu0 0
    %2385 = vmatpush1.bf16.msra.mxu0 %v1733
    %2386 = vmatprep.subr.bf16.mxu0 0
    %2387 = vmatpush1.bf16.msra.mxu0 %v1734
    %2388 = vmatprep.subr.bf16.mxu0 0
    %2389 = vmatpush1.bf16.msra.mxu0 %v1735
    %2390 = vmatprep.subr.bf16.mxu0 0
    %2391 = vmatpush1.bf16.msra.mxu0 %v1736
    %2392 = vmatprep.subr.bf16.mxu0 0
    %2393 = vmatpush1.bf16.msra.mxu0 %v1737
    %2394 = vmatprep.subr.bf16.mxu0 0
    %2395 = vmatpush1.bf16.msra.mxu0 %v1738
    %2396 = vmatprep.subr.bf16.mxu0 0
    %2397 = vmatpush1.bf16.msra.mxu0 %v1739
    %2398 = vmatprep.subr.bf16.mxu0 0
    %2399 = vmatpush1.bf16.msra.mxu0 %v1740
    %2400 = vmatprep.subr.bf16.mxu0 0
    %2401 = vmatpush1.bf16.msra.mxu0 %v1741
    %2402 = vmatprep.subr.bf16.mxu0 0
    %2403 = vmatpush1.bf16.msra.mxu0 %v1742
    %2404 = vmatprep.subr.bf16.mxu0 0
    %2405 = vmatpush1.bf16.msra.mxu0 %v1743
    %2406 = vmatprep.subr.bf16.mxu0 0
    %2407 = vmatpush1.bf16.msra.mxu0 %v1744
    %2408 = vmatprep.subr.bf16.mxu0 0
    %2409 = vmatpush1.bf16.msra.mxu0 %v1745
    %2410 = vmatprep.mubr.bf16.mxu0 %v394
    %2411 = vmatmul.mubr.bf16.gmra.mrb[0].mxu0 %v393
    %v2412 = vpop.f32.mrb[0].mxu0
    %v2413 = vadd.f32 %v2373, %v2412
    %v2414 = vpop.f32.mrb[0].mxu0
    %v2415 = vpop.f32.mrb[0].mxu0
    %v2416 = vpop.f32.mrb[0].mxu0
    %2417 = vdwg.mxu0
    %v2418 = vmax.f32 %v2413, 0.0
    %v2419 = vpack.c.bf16 %v2418, %v2418
    %v2420 = vld [vmem:[#allocation7] sm:$0xf]
    %v2421 = vld [vmem:[#allocation7 + $0x4] sm:$0xf]
    %v2422 = vld [vmem:[#allocation7 + $0x8] sm:$0xf]
    %v2423 = vld [vmem:[#allocation7 + $0xc] sm:$0xf]
    %v2424 = vld [vmem:[#allocation7 + $0x10] sm:$0xf]
    %v2425 = vld [vmem:[#allocation7 + $0x14] sm:$0xf]
    %v2426 = vld [vmem:[#allocation7 + $0x18] sm:$0xf]
    %v2427 = vld [vmem:[#allocation7 + $0x1c] sm:$0xf]
    %v2428 = vld [vmem:[#allocation7 + $0x20] sm:$0xf]
    %v2429 = vld [vmem:[#allocation7 + $0x24] sm:$0xf]
    %v2430 = vld [vmem:[#allocation7 + $0x28] sm:$0xf]
    %v2431 = vld [vmem:[#allocation7 + $0x2c] sm:$0xf]
    %v2432 = vld [vmem:[#allocation7 + $0x30] sm:$0xf]
    %v2433 = vld [vmem:[#allocation7 + $0x34] sm:$0xf]
    %v2434 = vld [vmem:[#allocation7 + $0x38] sm:$0xf]
    %v2435 = vld [vmem:[#allocation7 + $0x3c] sm:$0xf]
    %v2436 = vld [vmem:[%s4] sm:$0x1]
    %v2438 = vlaneseq
    %v2439 = vshrl.u32 %v2438, 7
    %v2440 = vsub.s32 0, %v2439
    %v2441 = vrot.slane %v2436, %v2440
    %v2459 = vunpack.c.l.b16 %v2420
    %v2460 = vunpack.c.l.b16 %v2421
    %v2461 = vunpack.c.l.b16 %v2422
    %v2462 = vunpack.c.l.b16 %v2423
    %v2463 = vunpack.c.l.b16 %v2424
    %v2464 = vunpack.c.l.b16 %v2425
    %v2465 = vunpack.c.l.b16 %v2426
    %v2466 = vunpack.c.l.b16 %v2427
    %v2467 = vunpack.c.l.b16 %v2428
    %v2468 = vunpack.c.l.b16 %v2429
    %v2469 = vunpack.c.l.b16 %v2430
    %v2470 = vunpack.c.l.b16 %v2431
    %v2471 = vunpack.c.l.b16 %v2432
    %v2472 = vunpack.c.l.b16 %v2433
    %v2473 = vunpack.c.l.b16 %v2434
    %v2474 = vunpack.c.l.b16 %v2435
    %v2475 = vpack.c.b16 %v2460, %v2459
    %v2476 = vpack.c.b16 %v2462, %v2461
    %v2477 = vpack.c.b16 %v2464, %v2463
    %v2478 = vpack.c.b16 %v2466, %v2465
    %v2479 = vpack.c.b16 %v2468, %v2467
    %v2480 = vpack.c.b16 %v2470, %v2469
    %v2481 = vpack.c.b16 %v2472, %v2471
    %v2482 = vpack.c.b16 %v2474, %v2473
    %2491 = vmatprep.subr.bf16.mxu0 0
    %2492 = vmatpush1.bf16.msra.mxu0 %v2475
    %2493 = vmatprep.subr.bf16.mxu0 0
    %2494 = vmatpush1.bf16.msra.mxu0 %v2476
    %2495 = vmatprep.subr.bf16.mxu0 0
    %2496 = vmatpush1.bf16.msra.mxu0 %v2477
    %2497 = vmatprep.subr.bf16.mxu0 0
    %2498 = vmatpush1.bf16.msra.mxu0 %v2478
    %2499 = vmatprep.subr.bf16.mxu0 0
    %2500 = vmatpush1.bf16.msra.mxu0 %v2479
    %2501 = vmatprep.subr.bf16.mxu0 0
    %2502 = vmatpush1.bf16.msra.mxu0 %v2480
    %2503 = vmatprep.subr.bf16.mxu0 0
    %2504 = vmatpush1.bf16.msra.mxu0 %v2481
    %2505 = vmatprep.subr.bf16.mxu0 0
    %2506 = vmatpush1.bf16.msra.mxu0 %v2482
    %2507 = vmatprep.subr.bf16.mxu0 0
    %2508 = vmatpush1.bf16.msra.mxu0 0
    %2509 = vmatprep.subr.bf16.mxu0 0
    %2510 = vmatpush1.bf16.msra.mxu0 0
    %2511 = vmatprep.subr.bf16.mxu0 0
    %2512 = vmatpush1.bf16.msra.mxu0 0
    %2513 = vmatprep.subr.bf16.mxu0 0
    %2514 = vmatpush1.bf16.msra.mxu0 0
    %2515 = vmatprep.subr.bf16.mxu0 0
    %2516 = vmatpush1.bf16.msra.mxu0 0
    %2517 = vmatprep.subr.bf16.mxu0 0
    %2518 = vmatpush1.bf16.msra.mxu0 0
    %2519 = vmatprep.subr.bf16.mxu0 0
    %2520 = vmatpush1.bf16.msra.mxu0 0
    %2521 = vmatprep.subr.bf16.mxu0 0
    %2522 = vmatpush1.bf16.msra.mxu0 0
    %2523 = vmatprep.mubr.bf16.mxu0 0
    %2524 = vmatmul.mubr.bf16.gmra.mrb[0].mxu0 %v2419
    %v2525 = vpop.f32.mrb[0].mxu0
    %v2526 = vadd.f32 %v2441, %v2525
    %v2527 = vpop.f32.mrb[0].mxu0
    %v2528 = vpop.f32.mrb[0].mxu0
    %v2529 = vpop.f32.mrb[0].mxu0
    %2530 = vdwg.mxu0
    %v2531 = vmax.f32 %v2526, 0.0
    %v2532 = vpack.c.bf16 %v2531, %v2531
    %v2533 = vld [vmem:[#allocation8] sm:$0xf]
    %v2534 = vld [vmem:[#allocation8 + $0x4] sm:$0xf]
    %v2535 = vld [vmem:[#allocation8 + $0x8] sm:$0xf]
    %v2536 = vld [vmem:[#allocation8 + $0xc] sm:$0xf]
    %v2537 = vld [vmem:[#allocation8 + $0x10] sm:$0xf]
    %v2538 = vld [vmem:[#allocation8 + $0x14] sm:$0xf]
    %v2539 = vld [vmem:[#allocation8 + $0x18] sm:$0xf]
    %v2540 = vld [vmem:[#allocation8 + $0x1c] sm:$0xf]
    %v2541 = vld [vmem:[#allocation8 + $0x20] sm:$0xf]
    %v2542 = vld [vmem:[#allocation8 + $0x24] sm:$0xf]
    %v2543 = vld [vmem:[#allocation8 + $0x28] sm:$0xf]
    %v2544 = vld [vmem:[#allocation8 + $0x2c] sm:$0xf]
    %v2545 = vld [vmem:[#allocation8 + $0x30] sm:$0xf]
    %v2546 = vld [vmem:[#allocation8 + $0x34] sm:$0xf]
    %v2547 = vld [vmem:[#allocation8 + $0x38] sm:$0xf]
    %v2548 = vld [vmem:[#allocation8 + $0x3c] sm:$0xf]
    %v2549 = vld [vmem:[%s6] sm:$0x1]
    %v2551 = vlaneseq
    %v2552 = vshrl.u32 %v2551, 7
    %v2553 = vsub.s32 0, %v2552
    %v2554 = vrot.slane %v2549, %v2553
    %v2572 = vunpack.c.l.b16 %v2533
    %v2573 = vunpack.c.l.b16 %v2534
    %v2574 = vunpack.c.l.b16 %v2535
    %v2575 = vunpack.c.l.b16 %v2536
    %v2576 = vunpack.c.l.b16 %v2537
    %v2577 = vunpack.c.l.b16 %v2538
    %v2578 = vunpack.c.l.b16 %v2539
    %v2579 = vunpack.c.l.b16 %v2540
    %v2580 = vunpack.c.l.b16 %v2541
    %v2581 = vunpack.c.l.b16 %v2542
    %v2582 = vunpack.c.l.b16 %v2543
    %v2583 = vunpack.c.l.b16 %v2544
    %v2584 = vunpack.c.l.b16 %v2545
    %v2585 = vunpack.c.l.b16 %v2546
    %v2586 = vunpack.c.l.b16 %v2547
    %v2587 = vunpack.c.l.b16 %v2548
    %v2588 = vpack.c.b16 %v2573, %v2572
    %v2589 = vpack.c.b16 %v2575, %v2574
    %v2590 = vpack.c.b16 %v2577, %v2576
    %v2591 = vpack.c.b16 %v2579, %v2578
    %v2592 = vpack.c.b16 %v2581, %v2580
    %v2593 = vpack.c.b16 %v2583, %v2582
    %v2594 = vpack.c.b16 %v2585, %v2584
    %v2595 = vpack.c.b16 %v2587, %v2586
    %2604 = vmatprep.subr.bf16.mxu0 0
    %2605 = vmatpush1.bf16.msra.mxu0 %v2588
    %2606 = vmatprep.subr.bf16.mxu0 0
    %2607 = vmatpush1.bf16.msra.mxu0 %v2589
    %2608 = vmatprep.subr.bf16.mxu0 0
    %2609 = vmatpush1.bf16.msra.mxu0 %v2590
    %2610 = vmatprep.subr.bf16.mxu0 0
    %2611 = vmatpush1.bf16.msra.mxu0 %v2591
    %2612 = vmatprep.subr.bf16.mxu0 0
    %2613 = vmatpush1.bf16.msra.mxu0 %v2592
    %2614 = vmatprep.subr.bf16.mxu0 0
    %2615 = vmatpush1.bf16.msra.mxu0 %v2593
    %2616 = vmatprep.subr.bf16.mxu0 0
    %2617 = vmatpush1.bf16.msra.mxu0 %v2594
    %2618 = vmatprep.subr.bf16.mxu0 0
    %2619 = vmatpush1.bf16.msra.mxu0 %v2595
    %2620 = vmatprep.subr.bf16.mxu0 0
    %2621 = vmatpush1.bf16.msra.mxu0 0
    %2622 = vmatprep.subr.bf16.mxu0 0
    %2623 = vmatpush1.bf16.msra.mxu0 0
    %2624 = vmatprep.subr.bf16.mxu0 0
    %2625 = vmatpush1.bf16.msra.mxu0 0
    %2626 = vmatprep.subr.bf16.mxu0 0
    %2627 = vmatpush1.bf16.msra.mxu0 0
    %2628 = vmatprep.subr.bf16.mxu0 0
    %2629 = vmatpush1.bf16.msra.mxu0 0
    %2630 = vmatprep.subr.bf16.mxu0 0
    %2631 = vmatpush1.bf16.msra.mxu0 0
    %2632 = vmatprep.subr.bf16.mxu0 0
    %2633 = vmatpush1.bf16.msra.mxu0 0
    %2634 = vmatprep.subr.bf16.mxu0 0
    %2635 = vmatpush1.bf16.msra.mxu0 0
    %2636 = vmatprep.mubr.bf16.mxu0 0
    %2637 = vmatmul.mubr.bf16.gmra.mrb[0].mxu0 %v2532
    %v2638 = vpop.f32.mrb[0].mxu0
    %v2639 = vadd.f32 %v2554, %v2638
    %v2640 = vpop.f32.mrb[0].mxu0
    %v2641 = vpop.f32.mrb[0].mxu0
    %v2642 = vpop.f32.mrb[0].mxu0
    %2643 = vdwg.mxu0
    %v2644 = vpack.c.bf16 %v2639, %v2639
    %v2647 = vunpack.c.l.s4 1966171168
    %v2648 = vunpack.c.0.s8 %v2647
    %v2649 = vlaneseq
    %v2650 = vshrl.u32 %v2649, 7
    %v2651 = vsub.s32 %v2648, %v2650
    %v2652 = vrot.slane %v2644, %v2651
    %v2653 = vcombine.high %v2652, %v2652
    %v2655 = vunpack.c.l.s4 1966171168
    %v2656 = vunpack.c.0.s8 %v2655
    %v2657 = vlaneseq
    %v2658 = vshrl.u32 %v2657, 7
    %v2659 = vsub.s32 %v2656, %v2658
    %v2660 = vrot.slane %v2652, %v2659
    %v2662 = vunpack.c.l.s4 1966171168
    %v2663 = vunpack.c.0.s8 %v2662
    %v2664 = vlaneseq
    %v2665 = vshrl.u32 %v2664, 7
    %v2666 = vsub.s32 %v2663, %v2665
    %v2667 = vrot.slane %v2653, %v2666
    %v2668 = vcombine.high %v2660, %v2660
    %v2669 = vcombine.high %v2667, %v2667
    %2674 = vst [vmem:[#allocation10] sm:$0x1] %v2660
    %2675 = vst [vmem:[#allocation10 + $0x1] sm:$0x1] %v2667
    %2676 = vst [vmem:[#allocation10 + $0x2] sm:$0x1] %v2668
    %2677 = vst [vmem:[#allocation10 + $0x3] sm:$0x1] %v2669
    // Predicated region
    $region46: #{tpu_custom_call.1} parent=1 // pred_check
      _
    $region47: #{tpu_custom_call.1} parent=1 // pred_check_branch
      %2679 = sbr.rel (0) target = $region49
    $region48: #{tpu_custom_call.1} parent=1 // pred_region
      %s2681 = ssub.s32 64, 16
      %2682 = vsyncadd [#allocation4], %s2681
      %s2683 = sshll.u32 [#allocation10], 4
      %s2684 = int_to_ptr.vmem [resolvable:$true] %s2683
      %2689 = dma.vmem_to_hbm [thread:$0]  %s2684, 16, %s7, [#allocation4], 16, 16, 1
    $region49: #{tpu_custom_call.1} parent=1 // pred_fallthru
      _
    // Predicated region
    $region50: #{tpu_custom_call.1} parent=1 // pred_check
      _
    $region51: #{tpu_custom_call.1} parent=1 // pred_check_branch
      %2691 = sbr.rel (0) target = $region53
    $region52: #{tpu_custom_call.1} parent=1 // pred_region
      %2692 = dma.done [#allocation4], 64
    $region53: #{tpu_custom_call.1} parent=1 // pred_fallthru
      _
    %2693 = vsyncpa [#allocation3], 1
    %2694 = vsyncpa [#allocation6], 1
    %2695 = vsyncpa [#allocation9], 1
    %2696 = vsyncpa [#allocation4], 1

</llo_original>
